<compile_context>
chip_gen: v6e
topology: v6e:2x2x1
jax: 0.10.0
libtpu: 0.0.40
codegen_flags: <defaults>
</compile_context>

<pallas_src>
import functools

import jax
import jax.numpy as jnp
from jax.experimental import pallas as pl
from jax.experimental.pallas import tpu as pltpu

NUM_CONTEXT = 2
NUM_JOINTS = 16
ALPHA = 0.8
H = W = 32
HW = H * W
NR_HEATMAPS = (NUM_CONTEXT + 1) * NUM_JOINTS          # 48
NUM_CTX_MAPS = NR_HEATMAPS - NUM_JOINTS               # 32
COORD_COLS = 8                                        # [x, y, 1, 0, 0, 0, 0, 0]


def _make_coords_aug():
    """(HW, 8) augmented softargmax grid: col0=x, col1=y, col2=1, rest 0."""
    xs = jnp.linspace(0.0, 1.0, W, dtype=jnp.float32)
    ys = jnp.linspace(0.0, 1.0, H, dtype=jnp.float32)
    cx = jnp.tile(xs, (H,))                            # x varies fastest along lanes
    cy = jnp.repeat(ys, W)
    ones = jnp.ones((HW,), jnp.float32)
    zeros = jnp.zeros((HW,), jnp.float32)
    cols = [cx, cy, ones] + [zeros] * (COORD_COLS - 3)
    return jnp.stack(cols, axis=-1)                    # (1024, 8)


def _make_context_select(bt):
    """(bt*16, bt*48) block-diagonal 0/1 matrix replacing the fixed Linear.

    Output row (b, j) sums the NUM_CONTEXT context channels of joint j of
    sample b under the flattened (sample, channel) row layout of the kernel.
    Built once on the host — no per-step iota/div/mod inside the kernel.
    """
    j_rows = bt * NUM_JOINTS
    m_rows = bt * NR_HEATMAPS
    ri = jnp.arange(j_rows, dtype=jnp.int32)[:, None]
    ci = jnp.arange(m_rows, dtype=jnp.int32)[None, :]
    first = ((ri // NUM_JOINTS) * NR_HEATMAPS + NUM_JOINTS
             + NUM_CONTEXT * (ri % NUM_JOINTS))
    return ((ci >= first) & (ci < first + NUM_CONTEXT)).astype(jnp.float32)


def _pose_kernel(x_ref, coords_ref, sel_ref, hs_ref, out_ref, *, alpha):
    bt = x_ref.shape[0]                                # batch tile (static)
    m_rows = bt * NR_HEATMAPS                          # flattened (sample, channel)

    x = x_ref[...]                                     # (bt, 48, 1024) f32
    m = jnp.max(x, axis=-1, keepdims=True)             # only cross-lane reduce
    e = jnp.exp(x - m)                                 # un-normalized softmax

    # Single MXU pass: columns [sum(e*x), sum(e*y), sum(e), 0...].
    e2 = e.reshape(m_rows, HW)                         # layout-preserving merge
    r = jnp.dot(e2, coords_ref[...], preferred_element_type=jnp.float32)  # (M, 8)

    inv = 1.0 / r[:, 2:3]                              # 1/sum(e) == max(softmax)
    prob = jax.nn.sigmoid(inv)                         # joint vis / context pc
    xy = r[:, 0:2] * inv                               # softargmax coords (M, 2)

    # ---- joint outputs -----------------------------------------------------
    inv_j = inv.reshape(bt, NR_HEATMAPS, 1)[:, :NUM_JOINTS, :]
    hs_ref[...] = e[:, :NUM_JOINTS, :] * inv_j         # normalized joint maps
    ys = xy.reshape(bt, NR_HEATMAPS, 2)[:, :NUM_JOINTS, :]      # (bt, 16, 2)
    vis = prob.reshape(bt, NR_HEATMAPS, 1)[:, :NUM_JOINTS, :]   # (bt, 16, 1)

    # ---- context aggregation -----------------------------------------------
    # r[:, 2] * inv == 1, so this single operand already carries
    # [yc_x*pc, yc_y*pc, pc]; one selection matmul yields all three sums.
    ctx_in = r[:, 0:3] * (inv * prob)                  # (M, 3)
    sums = jnp.dot(sel_ref[...], ctx_in,
                   preferred_element_type=jnp.float32) # (bt*16, 3)
    ctx = (sums[:, 0:2] / sums[:, 2:3]).reshape(bt, NUM_JOINTS, 2)

    # Direct slice writes (no lane concatenate).
    out_ref[:, :, 0:2] = ys * alpha + ctx * (1.0 - alpha)
    out_ref[:, :, 2:3] = vis


@functools.partial(jax.jit, static_argnums=(1, 2))
def _forward(x, alpha, b_tile):
    n = x.shape[0]
    bt = max(1, min(b_tile, n))
    n_pad = -(-n // bt) * bt

    xf = x.reshape(n, NR_HEATMAPS, HW).astype(jnp.float32)
    if n_pad != n:
        xf = jnp.pad(xf, ((0, n_pad - n), (0, 0), (0, 0)))

    coords = _make_coords_aug()
    sel = _make_context_select(bt)

    hs, out = pl.pallas_call(
        functools.partial(_pose_kernel, alpha=alpha),
        out_shape=(
            jax.ShapeDtypeStruct((n_pad, NUM_JOINTS, HW), jnp.float32),
            jax.ShapeDtypeStruct((n_pad, NUM_JOINTS, 3), jnp.float32),
        ),
        grid_spec=pltpu.PrefetchScalarGridSpec(
            num_scalar_prefetch=0,
            grid=(n_pad // bt,),
            in_specs=[
                pl.BlockSpec((bt, NR_HEATMAPS, HW), lambda i: (i, 0, 0)),
                pl.BlockSpec((HW, COORD_COLS), lambda i: (0, 0)),
                pl.BlockSpec((bt * NUM_JOINTS, bt * NR_HEATMAPS),
                             lambda i: (0, 0)),
            ],
            out_specs=(
                pl.BlockSpec((bt, NUM_JOINTS, HW), lambda i: (i, 0, 0)),
                pl.BlockSpec((bt, NUM_JOINTS, 3), lambda i: (i, 0, 0)),
            ),
        ),
        compiler_params=pltpu.CompilerParams(
            dimension_semantics=("parallel",),
        ),
    )(xf, coords, sel)

    hs = hs[:n].reshape(n, NUM_JOINTS, H, W)
    return hs, out[:n][None]           # matches torch: (hs, output.unsqueeze(0))


def pose_regression_with_context(x, alpha=ALPHA, b_tile=8):
    """x: (N, 48, 32, 32) float32 (NCHW, same as the PyTorch module)."""
    assert x.shape[1:] == (NR_HEATMAPS, H, W)
    return _forward(x, float(alpha), int(b_tile))


# ---------------- pure-JAX reference (for validation only) -----------------
def _reference(x, alpha=ALPHA):
    n = x.shape[0]
    xf = x.reshape(n, NR_HEATMAPS, HW).astype(jnp.float32)
    sm = jax.nn.softmax(xf, axis=-1)
    hs = sm[:, :NUM_JOINTS]
    hc = sm[:, NUM_JOINTS:]
    coords = _make_coords_aug()[:, :2]
    w = jnp.zeros((NUM_JOINTS, NUM_CTX_MAPS), dtype=jnp.float32)
    rows = jnp.repeat(jnp.arange(NUM_JOINTS), NUM_CONTEXT)
    cols = jnp.arange(NUM_CTX_MAPS)
    w = w.at[rows, cols].set(1.0)
    hp = jax.lax.Precision.HIGHEST
    ys = jnp.einsum("bcp,pd->bcd", hs, coords, precision=hp)
    yc = jnp.einsum("bcp,pd->bcd", hc, coords, precision=hp)
    vis = jax.nn.sigmoid(jnp.max(hs, axis=-1))[..., None]
    pc = jax.nn.sigmoid(jnp.max(hc, axis=-1))[..., None]
    pxyc = jnp.concatenate([yc * pc, pc], axis=-1)
    sums = jnp.einsum("jc,bcd->bjd", w, pxyc, precision=hp)
    ctx = sums[..., :2] / sums[..., 2:3]
    pose = ys * alpha + ctx * (1.0 - alpha)
    out = jnp.concatenate([pose, vis], axis=-1)
    return hs.reshape(n, NUM_JOINTS, H, W), out[None]


if __name__ == "__main__":
    key = jax.random.PRNGKey(0)

    # Primary small-shape check (batch=2; spatial/channels fixed by the module).
    x = jax.random.normal(key, (2, NR_HEATMAPS, H, W), dtype=jnp.float32)
    hs, out = pose_regression_with_context(x)
    jax.block_until_ready((hs, out))

    hs_ref, out_ref = _reference(x)
    assert hs.shape == (2, NUM_JOINTS, H, W)
    assert out.shape == (1, 2, NUM_JOINTS, 3)
    # Tolerances cover MXU default-precision f32 matmul on any TPU generation.
    assert jnp.allclose(hs, hs_ref, atol=1e-4, rtol=1e-3)
    assert jnp.allclose(out, out_ref, atol=3e-3, rtol=3e-3)

    # Secondary check exercising multi-step grid + batch padding (n=9, bt=4).
    x2 = jax.random.normal(jax.random.PRNGKey(1), (9, NR_HEATMAPS, H, W),
                           dtype=jnp.float32)
    hs2, out2 = pose_regression_with_context(x2, b_tile=4)
    jax.block_until_ready((hs2, out2))
    hs2_ref, out2_ref = _reference(x2)
    assert jnp.allclose(hs2, hs2_ref, atol=1e-4, rtol=1e-3)
    assert jnp.allclose(out2, out2_ref, atol=3e-3, rtol=3e-3)

    print("KERNEL_OK")
</pallas_src>

<mosaic_0001>
module attributes {stable_mosaic.version = 11 : i64} {
  func.func @_pose_kernel(%arg0: i32, %arg1: memref<2x48x1024xf32, #tpu.memory_space<vmem>>, %arg2: memref<1024x8xf32, #tpu.memory_space<vmem>>, %arg3: memref<32x96xf32, #tpu.memory_space<vmem>>, %arg4: memref<2x16x1024xf32, #tpu.memory_space<vmem>>, %arg5: memref<2x16x3xf32, #tpu.memory_space<vmem>>) attributes {dimension_semantics = [#tpu.dimension_semantics<parallel>], iteration_bounds = array<i64: 1>, scalar_prefetch = 0 : i64, scratch_operands = 0 : i64, tpu.core_type = #tpu.core_type<tc>, window_params = [{transform_indices = @transform_0, window_bounds = array<i64: 2, 48, 1024>}, {pipeline_mode = #tpu.pipeline_mode<synchronous>, transform_indices = @transform_1, window_bounds = array<i64: 1024, 8>}, {pipeline_mode = #tpu.pipeline_mode<synchronous>, transform_indices = @transform_2, window_bounds = array<i64: 32, 96>}, {transform_indices = @transform_3, window_bounds = array<i64: 2, 16, 1024>}, {transform_indices = @transform_4, window_bounds = array<i64: 2, 16, 3>}]} {
    %c0 = arith.constant 0 : index
    %c0_0 = arith.constant 0 : index
    %c0_1 = arith.constant 0 : index
    %0 = vector.load %arg1[%c0, %c0_0, %c0_1] : memref<2x48x1024xf32, #tpu.memory_space<vmem>>, vector<2x48x1024xf32>
    %cst = arith.constant dense<0xFF800000> : vector<2x48xf32>
    %1 = vector.multi_reduction <maximumf>, %0, %cst [2] : vector<2x48x1024xf32> to vector<2x48xf32>
    %2 = vector.shape_cast %1 : vector<2x48xf32> to vector<2x48x1xf32>
    %3 = vector.broadcast %2 : vector<2x48x1xf32> to vector<2x48x1024xf32>
    %4 = arith.subf %0, %3 : vector<2x48x1024xf32>
    %5 = math.exp %4 : vector<2x48x1024xf32>
    %6 = vector.shape_cast %5 : vector<2x48x1024xf32> to vector<96x1024xf32>
    %c0_2 = arith.constant 0 : index
    %c0_3 = arith.constant 0 : index
    %7 = vector.load %arg2[%c0_2, %c0_3] : memref<1024x8xf32, #tpu.memory_space<vmem>>, vector<1024x8xf32>
    %cst_4 = arith.constant dense<0.000000e+00> : vector<96x8xf32>
    %8 = tpu.matmul %6, %7, %cst_4 {dimension_numbers = #tpu.dot_dimension_numbers<[1], [0], [0], [1], [0, 0, 1, 1], [], []>} : vector<96x1024xf32>, vector<1024x8xf32>, vector<96x8xf32> -> vector<96x8xf32>
    %9 = vector.extract_strided_slice %8 {offsets = [0, 2], sizes = [96, 1], strides = [1, 1]} : vector<96x8xf32> to vector<96x1xf32>
    %cst_5 = arith.constant 1.000000e+00 : f32
    %10 = vector.broadcast %cst_5 : f32 to vector<96x1xf32>
    %11 = arith.divf %10, %9 : vector<96x1xf32>
    %12 = arith.negf %11 : vector<96x1xf32>
    %13 = math.exp %12 : vector<96x1xf32>
    %cst_6 = arith.constant 1.000000e+00 : f32
    %14 = vector.broadcast %cst_6 : f32 to vector<96x1xf32>
    %15 = arith.addf %14, %13 : vector<96x1xf32>
    %16 = arith.divf %14, %15 : vector<96x1xf32>
    %17 = vector.extract_strided_slice %8 {offsets = [0, 0], sizes = [96, 2], strides = [1, 1]} : vector<96x8xf32> to vector<96x2xf32>
    %18 = vector.broadcast %11 : vector<96x1xf32> to vector<96x2xf32>
    %19 = arith.mulf %17, %18 : vector<96x2xf32>
    %20 = vector.shape_cast %11 : vector<96x1xf32> to vector<2x48x1xf32>
    %21 = vector.extract_strided_slice %20 {offsets = [0, 0, 0], sizes = [2, 16, 1], strides = [1, 1, 1]} : vector<2x48x1xf32> to vector<2x16x1xf32>
    %22 = vector.extract_strided_slice %5 {offsets = [0, 0, 0], sizes = [2, 16, 1024], strides = [1, 1, 1]} : vector<2x48x1024xf32> to vector<2x16x1024xf32>
    %23 = vector.broadcast %21 : vector<2x16x1xf32> to vector<2x16x1024xf32>
    %24 = arith.mulf %22, %23 : vector<2x16x1024xf32>
    %c0_7 = arith.constant 0 : index
    %c0_8 = arith.constant 0 : index
    %c0_9 = arith.constant 0 : index
    %25 = vector.load %arg4[%c0_7, %c0_8, %c0_9] : memref<2x16x1024xf32, #tpu.memory_space<vmem>>, vector<2x16x1024xf32>
    tpu.vector_store %arg4[%c0_7, %c0_8, %c0_9], %24 {strides = array<i32>} : memref<2x16x1024xf32, #tpu.memory_space<vmem>>, vector<2x16x1024xf32>,
    %26 = vector.shape_cast %19 : vector<96x2xf32> to vector<2x48x2xf32>
    %27 = vector.extract_strided_slice %26 {offsets = [0, 0, 0], sizes = [2, 16, 2], strides = [1, 1, 1]} : vector<2x48x2xf32> to vector<2x16x2xf32>
    %28 = vector.shape_cast %16 : vector<96x1xf32> to vector<2x48x1xf32>
    %29 = vector.extract_strided_slice %28 {offsets = [0, 0, 0], sizes = [2, 16, 1], strides = [1, 1, 1]} : vector<2x48x1xf32> to vector<2x16x1xf32>
    %30 = vector.extract_strided_slice %8 {offsets = [0, 0], sizes = [96, 3], strides = [1, 1]} : vector<96x8xf32> to vector<96x3xf32>
    %31 = arith.mulf %11, %16 : vector<96x1xf32>
    %32 = vector.broadcast %31 : vector<96x1xf32> to vector<96x3xf32>
    %33 = arith.mulf %30, %32 : vector<96x3xf32>
    %c0_10 = arith.constant 0 : index
    %c0_11 = arith.constant 0 : index
    %34 = vector.load %arg3[%c0_10, %c0_11] : memref<32x96xf32, #tpu.memory_space<vmem>>, vector<32x96xf32>
    %cst_12 = arith.constant dense<0.000000e+00> : vector<32x3xf32>
    %35 = tpu.matmul %34, %33, %cst_12 {dimension_numbers = #tpu.dot_dimension_numbers<[1], [0], [0], [1], [0, 0, 1, 1], [], []>} : vector<32x96xf32>, vector<96x3xf32>, vector<32x3xf32> -> vector<32x3xf32>
    %36 = vector.extract_strided_slice %35 {offsets = [0, 0], sizes = [32, 2], strides = [1, 1]} : vector<32x3xf32> to vector<32x2xf32>
    %37 = vector.extract_strided_slice %35 {offsets = [0, 2], sizes = [32, 1], strides = [1, 1]} : vector<32x3xf32> to vector<32x1xf32>
    %38 = vector.broadcast %37 : vector<32x1xf32> to vector<32x2xf32>
    %39 = arith.divf %36, %38 : vector<32x2xf32>
    %40 = vector.shape_cast %39 : vector<32x2xf32> to vector<2x16x2xf32>
    %cst_13 = arith.constant 8.000000e-01 : f32
    %41 = vector.broadcast %cst_13 : f32 to vector<2x16x2xf32>
    %42 = arith.mulf %27, %41 : vector<2x16x2xf32>
    %cst_14 = arith.constant 2.000000e-01 : f32
    %43 = vector.broadcast %cst_14 : f32 to vector<2x16x2xf32>
    %44 = arith.mulf %40, %43 : vector<2x16x2xf32>
    %45 = arith.addf %42, %44 : vector<2x16x2xf32>
    %c0_15 = arith.constant 0 : index
    %c0_16 = arith.constant 0 : index
    %c0_17 = arith.constant 0 : index
    %46 = vector.load %arg5[%c0_15, %c0_16, %c0_17] : memref<2x16x3xf32, #tpu.memory_space<vmem>>, vector<2x16x2xf32>
    tpu.vector_store %arg5[%c0_15, %c0_16, %c0_17], %45 {strides = array<i32>} : memref<2x16x3xf32, #tpu.memory_space<vmem>>, vector<2x16x2xf32>,
    %c0_18 = arith.constant 0 : index
    %c0_19 = arith.constant 0 : index
    %c2 = arith.constant 2 : index
    %47 = vector.load %arg5[%c0_18, %c0_19, %c2] : memref<2x16x3xf32, #tpu.memory_space<vmem>>, vector<2x16x1xf32>
    tpu.vector_store %arg5[%c0_18, %c0_19, %c2], %29 {strides = array<i32>} : memref<2x16x3xf32, #tpu.memory_space<vmem>>, vector<2x16x1xf32>,
    return
  }
  func.func @transform_0(%arg0: i32) -> (i32, i32, i32) {
    %c0_i32 = arith.constant 0 : i32
    %c0_i32_0 = arith.constant 0 : i32
    %c0_i32_1 = arith.constant 0 : i32
    return %arg0, %c0_i32, %c0_i32_0 : i32, i32, i32
  }
  func.func @transform_1(%arg0: i32) -> (i32, i32) {
    %c0_i32 = arith.constant 0 : i32
    %c0_i32_0 = arith.constant 0 : i32
    %c0_i32_1 = arith.constant 0 : i32
    return %c0_i32, %c0_i32_0 : i32, i32
  }
  func.func @transform_2(%arg0: i32) -> (i32, i32) {
    %c0_i32 = arith.constant 0 : i32
    %c0_i32_0 = arith.constant 0 : i32
    %c0_i32_1 = arith.constant 0 : i32
    return %c0_i32, %c0_i32_0 : i32, i32
  }
  func.func @transform_3(%arg0: i32) -> (i32, i32, i32) {
    %c0_i32 = arith.constant 0 : i32
    %c0_i32_0 = arith.constant 0 : i32
    %c0_i32_1 = arith.constant 0 : i32
    return %arg0, %c0_i32, %c0_i32_0 : i32, i32, i32
  }
  func.func @transform_4(%arg0: i32) -> (i32, i32, i32) {
    %c0_i32 = arith.constant 0 : i32
    %c0_i32_0 = arith.constant 0 : i32
    %c0_i32_1 = arith.constant 0 : i32
    return %arg0, %c0_i32, %c0_i32_0 : i32, i32, i32
  }
}

</mosaic_0001>

<llo_original>
// kernel: tile.8
$region0: #{tile.8}
  #allocation0 [shape = 's32[1]{0}', space=sflag, size = 0x4, scoped, tag = 'scoped memory for tile.8']
  %s0 = inlined_call_operand.vmem [shape: f32[32], index: 0, kind: input, shape index: {}]
  %s1 = inlined_call_operand.vmem [shape: f32[32,32], index: 1, kind: output, shape index: {}]
  // Predicated region
  $region2: #{tile.8} parent=0 // pred_check
    _
  $region3: #{tile.8} parent=0 // pred_check_branch
    %3 = sbr.rel (0) target = $region5
  $region4: #{tile.8} parent=0 // pred_region
    _
  $region5: #{tile.8} parent=0 // pred_fallthru
    _
  %v4 = vld [vmem:[%s0] ss:$0 sm:$0xff]
  %5 = vst [vmem:[%s1] sm:$0xff] %v4
  %s6 = scalar_lea.vmem %s1, 8
  %7 = vst [vmem:[%s6] sm:$0xff] %v4
  %s8 = scalar_lea.vmem %s1, 16
  %9 = vst [vmem:[%s8] sm:$0xff] %v4
  %s10 = scalar_lea.vmem %s1, 24
  %11 = vst [vmem:[%s10] sm:$0xff] %v4

// kernel: _forward.1
$region0: #{_forward.1}
  #allocation0 [shape = 'u32[]', space=smem, size = 0x4, offset = 0x4, fixed_abs, tag = 'smem constant byte address 0x4 - core index']
  #allocation1 [shape = 'u32[144,128]{1,0:T(1,128)}', space=vmem, size = 0x12000, scoped, tag = 'internal scratch']
  %s0 = inlined_call_operand.vmem [shape: f32[2,48,1024], index: 0, kind: input, shape index: {}]
  %s1 = inlined_call_operand.vmem [shape: f32[1024,8], index: 1, kind: input, shape index: {}]
  %s2 = inlined_call_operand.vmem [shape: f32[32,96], index: 2, kind: input, shape index: {}]
  %s3 = inlined_call_operand.vmem [shape: f32[2,16,1024], index: 3, kind: output, shape index: {0}]
  %s4 = inlined_call_operand.vmem [shape: f32[2,16,3], index: 4, kind: output, shape index: {1}]
  %5 = xla_tuple %s3, %s4
  %s6 = sld [smem:[#allocation0]]
  $region30: #{_forward.1} parent=0
    _
  %s8 = ssub.s32 1, %s6
  %s9 = scalar_select 0, %s8, %s6
  // Predicated region
  $region2: #{_forward.1} parent=0 // pred_check
    _
  $region3: #{_forward.1} parent=0 // pred_check_branch
    %11 = sbr.rel (0) target = $region5
  $region4: #{_forward.1} parent=0 // pred_region
    _
  $region5: #{_forward.1} parent=0 // pred_fallthru
    _
  // Predicated region
  $region6: #{_forward.1} parent=0 // pred_check
    _
  $region7: #{_forward.1} parent=0 // pred_check_branch
    %13 = sbr.rel (0) target = $region9
  $region8: #{_forward.1} parent=0 // pred_region
    _
  $region9: #{_forward.1} parent=0 // pred_fallthru
    _
  // Predicated region
  $region10: #{_forward.1} parent=0 // pred_check
    _
  $region11: #{_forward.1} parent=0 // pred_check_branch
    %15 = sbr.rel (0) target = $region13
  $region12: #{_forward.1} parent=0 // pred_region
    _
  $region13: #{_forward.1} parent=0 // pred_fallthru
    _
  %v16 = vld [vmem:[%s0] sm:$0xff]
  %v17 = vld [vmem:[%s0 + $0x8] sm:$0xff]
  %v18 = vld [vmem:[%s0 + $0x10] sm:$0xff]
  %v19 = vld [vmem:[%s0 + $0x18] sm:$0xff]
  %v20 = vld [vmem:[%s0 + $0x20] sm:$0xff]
  %v21 = vld [vmem:[%s0 + $0x28] sm:$0xff]
  %v22 = vld [vmem:[%s0 + $0x30] sm:$0xff]
  %v23 = vld [vmem:[%s0 + $0x38] sm:$0xff]
  %v24 = vld [vmem:[%s0 + $0x40] sm:$0xff]
  %v25 = vld [vmem:[%s0 + $0x48] sm:$0xff]
  %v26 = vld [vmem:[%s0 + $0x50] sm:$0xff]
  %v27 = vld [vmem:[%s0 + $0x58] sm:$0xff]
  %v28 = vld [vmem:[%s0 + $0x60] sm:$0xff]
  %v29 = vld [vmem:[%s0 + $0x68] sm:$0xff]
  %v30 = vld [vmem:[%s0 + $0x70] sm:$0xff]
  %v31 = vld [vmem:[%s0 + $0x78] sm:$0xff]
  %v32 = vld [vmem:[%s0 + $0x80] sm:$0xff]
  %v33 = vld [vmem:[%s0 + $0x88] sm:$0xff]
  %v34 = vld [vmem:[%s0 + $0x90] sm:$0xff]
  %v35 = vld [vmem:[%s0 + $0x98] sm:$0xff]
  %v36 = vld [vmem:[%s0 + $0xa0] sm:$0xff]
  %v37 = vld [vmem:[%s0 + $0xa8] sm:$0xff]
  %v38 = vld [vmem:[%s0 + $0xb0] sm:$0xff]
  %v39 = vld [vmem:[%s0 + $0xb8] sm:$0xff]
  %v40 = vld [vmem:[%s0 + $0xc0] sm:$0xff]
  %v41 = vld [vmem:[%s0 + $0xc8] sm:$0xff]
  %v42 = vld [vmem:[%s0 + $0xd0] sm:$0xff]
  %v43 = vld [vmem:[%s0 + $0xd8] sm:$0xff]
  %v44 = vld [vmem:[%s0 + $0xe0] sm:$0xff]
  %v45 = vld [vmem:[%s0 + $0xe8] sm:$0xff]
  %v46 = vld [vmem:[%s0 + $0xf0] sm:$0xff]
  %v47 = vld [vmem:[%s0 + $0xf8] sm:$0xff]
  %v48 = vld [vmem:[%s0 + $0x100] sm:$0xff]
  %v49 = vld [vmem:[%s0 + $0x108] sm:$0xff]
  %v50 = vld [vmem:[%s0 + $0x110] sm:$0xff]
  %v51 = vld [vmem:[%s0 + $0x118] sm:$0xff]
  %v52 = vld [vmem:[%s0 + $0x120] sm:$0xff]
  %v53 = vld [vmem:[%s0 + $0x128] sm:$0xff]
  %v54 = vld [vmem:[%s0 + $0x130] sm:$0xff]
  %v55 = vld [vmem:[%s0 + $0x138] sm:$0xff]
  %v56 = vld [vmem:[%s0 + $0x140] sm:$0xff]
  %v57 = vld [vmem:[%s0 + $0x148] sm:$0xff]
  %v58 = vld [vmem:[%s0 + $0x150] sm:$0xff]
  %v59 = vld [vmem:[%s0 + $0x158] sm:$0xff]
  %v60 = vld [vmem:[%s0 + $0x160] sm:$0xff]
  %v61 = vld [vmem:[%s0 + $0x168] sm:$0xff]
  %v62 = vld [vmem:[%s0 + $0x170] sm:$0xff]
  %v63 = vld [vmem:[%s0 + $0x178] sm:$0xff]
  %v64 = vld [vmem:[%s0 + $0x180] sm:$0xff]
  %v65 = vld [vmem:[%s0 + $0x188] sm:$0xff]
  %v66 = vld [vmem:[%s0 + $0x190] sm:$0xff]
  %v67 = vld [vmem:[%s0 + $0x198] sm:$0xff]
  %v68 = vld [vmem:[%s0 + $0x1a0] sm:$0xff]
  %v69 = vld [vmem:[%s0 + $0x1a8] sm:$0xff]
  %v70 = vld [vmem:[%s0 + $0x1b0] sm:$0xff]
  %v71 = vld [vmem:[%s0 + $0x1b8] sm:$0xff]
  %v72 = vld [vmem:[%s0 + $0x1c0] sm:$0xff]
  %v73 = vld [vmem:[%s0 + $0x1c8] sm:$0xff]
  %v74 = vld [vmem:[%s0 + $0x1d0] sm:$0xff]
  %v75 = vld [vmem:[%s0 + $0x1d8] sm:$0xff]
  %v76 = vld [vmem:[%s0 + $0x1e0] sm:$0xff]
  %v77 = vld [vmem:[%s0 + $0x1e8] sm:$0xff]
  %v78 = vld [vmem:[%s0 + $0x1f0] sm:$0xff]
  %v79 = vld [vmem:[%s0 + $0x1f8] sm:$0xff]
  %v80 = vld [vmem:[%s0 + $0x200] sm:$0xff]
  %v81 = vld [vmem:[%s0 + $0x208] sm:$0xff]
  %v82 = vld [vmem:[%s0 + $0x210] sm:$0xff]
  %v83 = vld [vmem:[%s0 + $0x218] sm:$0xff]
  %v84 = vld [vmem:[%s0 + $0x220] sm:$0xff]
  %v85 = vld [vmem:[%s0 + $0x228] sm:$0xff]
  %v86 = vld [vmem:[%s0 + $0x230] sm:$0xff]
  %v87 = vld [vmem:[%s0 + $0x238] sm:$0xff]
  %v88 = vld [vmem:[%s0 + $0x240] sm:$0xff]
  %v89 = vld [vmem:[%s0 + $0x248] sm:$0xff]
  %v90 = vld [vmem:[%s0 + $0x250] sm:$0xff]
  %v91 = vld [vmem:[%s0 + $0x258] sm:$0xff]
  %v92 = vld [vmem:[%s0 + $0x260] sm:$0xff]
  %v93 = vld [vmem:[%s0 + $0x268] sm:$0xff]
  %v94 = vld [vmem:[%s0 + $0x270] sm:$0xff]
  %v95 = vld [vmem:[%s0 + $0x278] sm:$0xff]
  %v96 = vld [vmem:[%s0 + $0x280] sm:$0xff]
  %v97 = vld [vmem:[%s0 + $0x288] sm:$0xff]
  %v98 = vld [vmem:[%s0 + $0x290] sm:$0xff]
  %v99 = vld [vmem:[%s0 + $0x298] sm:$0xff]
  %v100 = vld [vmem:[%s0 + $0x2a0] sm:$0xff]
  %v101 = vld [vmem:[%s0 + $0x2a8] sm:$0xff]
  %v102 = vld [vmem:[%s0 + $0x2b0] sm:$0xff]
  %v103 = vld [vmem:[%s0 + $0x2b8] sm:$0xff]
  %v104 = vld [vmem:[%s0 + $0x2c0] sm:$0xff]
  %v105 = vld [vmem:[%s0 + $0x2c8] sm:$0xff]
  %v106 = vld [vmem:[%s0 + $0x2d0] sm:$0xff]
  %v107 = vld [vmem:[%s0 + $0x2d8] sm:$0xff]
  %v108 = vld [vmem:[%s0 + $0x2e0] sm:$0xff]
  %v109 = vld [vmem:[%s0 + $0x2e8] sm:$0xff]
  %v110 = vld [vmem:[%s0 + $0x2f0] sm:$0xff]
  %v111 = vld [vmem:[%s0 + $0x2f8] sm:$0xff]
  %v112 = vmax.f32 %v16, %v17
  %v113 = vmax.f32 %v112, %v18
  %v114 = vmax.f32 %v113, %v19
  %v115 = vmax.f32 %v114, %v20
  %v116 = vmax.f32 %v115, %v21
  %v117 = vmax.f32 %v116, %v22
  %v118 = vmax.f32 %v117, %v23
  %119 = vmax.xlane.f32.xlu0 %v118
  %v120 = vpop.xlane.xlu0 %119
  %v121 = vmax.f32 %v24, %v25
  %v122 = vmax.f32 %v121, %v26
  %v123 = vmax.f32 %v122, %v27
  %v124 = vmax.f32 %v123, %v28
  %v125 = vmax.f32 %v124, %v29
  %v126 = vmax.f32 %v125, %v30
  %v127 = vmax.f32 %v126, %v31
  %128 = vmax.xlane.f32.xlu0 %v127
  %v129 = vpop.xlane.xlu0 %128
  %v130 = vmax.f32 %v32, %v33
  %v131 = vmax.f32 %v130, %v34
  %v132 = vmax.f32 %v131, %v35
  %v133 = vmax.f32 %v132, %v36
  %v134 = vmax.f32 %v133, %v37
  %v135 = vmax.f32 %v134, %v38
  %v136 = vmax.f32 %v135, %v39
  %137 = vmax.xlane.f32.xlu0 %v136
  %v138 = vpop.xlane.xlu0 %137
  %v139 = vmax.f32 %v40, %v41
  %v140 = vmax.f32 %v139, %v42
  %v141 = vmax.f32 %v140, %v43
  %v142 = vmax.f32 %v141, %v44
  %v143 = vmax.f32 %v142, %v45
  %v144 = vmax.f32 %v143, %v46
  %v145 = vmax.f32 %v144, %v47
  %146 = vmax.xlane.f32.xlu0 %v145
  %v147 = vpop.xlane.xlu0 %146
  %v148 = vmax.f32 %v48, %v49
  %v149 = vmax.f32 %v148, %v50
  %v150 = vmax.f32 %v149, %v51
  %v151 = vmax.f32 %v150, %v52
  %v152 = vmax.f32 %v151, %v53
  %v153 = vmax.f32 %v152, %v54
  %v154 = vmax.f32 %v153, %v55
  %155 = vmax.xlane.f32.xlu0 %v154
  %v156 = vpop.xlane.xlu0 %155
  %v157 = vmax.f32 %v56, %v57
  %v158 = vmax.f32 %v157, %v58
  %v159 = vmax.f32 %v158, %v59
  %v160 = vmax.f32 %v159, %v60
  %v161 = vmax.f32 %v160, %v61
  %v162 = vmax.f32 %v161, %v62
  %v163 = vmax.f32 %v162, %v63
  %164 = vmax.xlane.f32.xlu0 %v163
  %v165 = vpop.xlane.xlu0 %164
  %v166 = vmax.f32 %v64, %v65
  %v167 = vmax.f32 %v166, %v66
  %v168 = vmax.f32 %v167, %v67
  %v169 = vmax.f32 %v168, %v68
  %v170 = vmax.f32 %v169, %v69
  %v171 = vmax.f32 %v170, %v70
  %v172 = vmax.f32 %v171, %v71
  %173 = vmax.xlane.f32.xlu0 %v172
  %v174 = vpop.xlane.xlu0 %173
  %v175 = vmax.f32 %v72, %v73
  %v176 = vmax.f32 %v175, %v74
  %v177 = vmax.f32 %v176, %v75
  %v178 = vmax.f32 %v177, %v76
  %v179 = vmax.f32 %v178, %v77
  %v180 = vmax.f32 %v179, %v78
  %v181 = vmax.f32 %v180, %v79
  %182 = vmax.xlane.f32.xlu0 %v181
  %v183 = vpop.xlane.xlu0 %182
  %v184 = vmax.f32 %v80, %v81
  %v185 = vmax.f32 %v184, %v82
  %v186 = vmax.f32 %v185, %v83
  %v187 = vmax.f32 %v186, %v84
  %v188 = vmax.f32 %v187, %v85
  %v189 = vmax.f32 %v188, %v86
  %v190 = vmax.f32 %v189, %v87
  %191 = vmax.xlane.f32.xlu0 %v190
  %v192 = vpop.xlane.xlu0 %191
  %v193 = vmax.f32 %v88, %v89
  %v194 = vmax.f32 %v193, %v90
  %v195 = vmax.f32 %v194, %v91
  %v196 = vmax.f32 %v195, %v92
  %v197 = vmax.f32 %v196, %v93
  %v198 = vmax.f32 %v197, %v94
  %v199 = vmax.f32 %v198, %v95
  %200 = vmax.xlane.f32.xlu0 %v199
  %v201 = vpop.xlane.xlu0 %200
  %v202 = vmax.f32 %v96, %v97
  %v203 = vmax.f32 %v202, %v98
  %v204 = vmax.f32 %v203, %v99
  %v205 = vmax.f32 %v204, %v100
  %v206 = vmax.f32 %v205, %v101
  %v207 = vmax.f32 %v206, %v102
  %v208 = vmax.f32 %v207, %v103
  %209 = vmax.xlane.f32.xlu0 %v208
  %v210 = vpop.xlane.xlu0 %209
  %v211 = vmax.f32 %v104, %v105
  %v212 = vmax.f32 %v211, %v106
  %v213 = vmax.f32 %v212, %v107
  %v214 = vmax.f32 %v213, %v108
  %v215 = vmax.f32 %v214, %v109
  %v216 = vmax.f32 %v215, %v110
  %v217 = vmax.f32 %v216, %v111
  %218 = vmax.xlane.f32.xlu0 %v217
  %v219 = vpop.xlane.xlu0 %218
  %v220 = vsub.f32 %v16, %v120
  %v221 = vsub.f32 %v17, %v120
  %v222 = vsub.f32 %v18, %v120
  %v223 = vsub.f32 %v19, %v120
  %v224 = vsub.f32 %v20, %v120
  %v225 = vsub.f32 %v21, %v120
  %v226 = vsub.f32 %v22, %v120
  %v227 = vsub.f32 %v23, %v120
  %v228 = vsub.f32 %v24, %v129
  %v229 = vsub.f32 %v25, %v129
  %v230 = vsub.f32 %v26, %v129
  %v231 = vsub.f32 %v27, %v129
  %v232 = vsub.f32 %v28, %v129
  %v233 = vsub.f32 %v29, %v129
  %v234 = vsub.f32 %v30, %v129
  %v235 = vsub.f32 %v31, %v129
  %v236 = vsub.f32 %v32, %v138
  %v237 = vsub.f32 %v33, %v138
  %v238 = vsub.f32 %v34, %v138
  %v239 = vsub.f32 %v35, %v138
  %v240 = vsub.f32 %v36, %v138
  %v241 = vsub.f32 %v37, %v138
  %v242 = vsub.f32 %v38, %v138
  %v243 = vsub.f32 %v39, %v138
  %v244 = vsub.f32 %v40, %v147
  %v245 = vsub.f32 %v41, %v147
  %v246 = vsub.f32 %v42, %v147
  %v247 = vsub.f32 %v43, %v147
  %v248 = vsub.f32 %v44, %v147
  %v249 = vsub.f32 %v45, %v147
  %v250 = vsub.f32 %v46, %v147
  %v251 = vsub.f32 %v47, %v147
  %v252 = vsub.f32 %v48, %v156
  %v253 = vsub.f32 %v49, %v156
  %v254 = vsub.f32 %v50, %v156
  %v255 = vsub.f32 %v51, %v156
  %v256 = vsub.f32 %v52, %v156
  %v257 = vsub.f32 %v53, %v156
  %v258 = vsub.f32 %v54, %v156
  %v259 = vsub.f32 %v55, %v156
  %v260 = vsub.f32 %v56, %v165
  %v261 = vsub.f32 %v57, %v165
  %v262 = vsub.f32 %v58, %v165
  %v263 = vsub.f32 %v59, %v165
  %v264 = vsub.f32 %v60, %v165
  %v265 = vsub.f32 %v61, %v165
  %v266 = vsub.f32 %v62, %v165
  %v267 = vsub.f32 %v63, %v165
  %v268 = vsub.f32 %v64, %v174
  %v269 = vsub.f32 %v65, %v174
  %v270 = vsub.f32 %v66, %v174
  %v271 = vsub.f32 %v67, %v174
  %v272 = vsub.f32 %v68, %v174
  %v273 = vsub.f32 %v69, %v174
  %v274 = vsub.f32 %v70, %v174
  %v275 = vsub.f32 %v71, %v174
  %v276 = vsub.f32 %v72, %v183
  %v277 = vsub.f32 %v73, %v183
  %v278 = vsub.f32 %v74, %v183
  %v279 = vsub.f32 %v75, %v183
  %v280 = vsub.f32 %v76, %v183
  %v281 = vsub.f32 %v77, %v183
  %v282 = vsub.f32 %v78, %v183
  %v283 = vsub.f32 %v79, %v183
  %v284 = vsub.f32 %v80, %v192
  %v285 = vsub.f32 %v81, %v192
  %v286 = vsub.f32 %v82, %v192
  %v287 = vsub.f32 %v83, %v192
  %v288 = vsub.f32 %v84, %v192
  %v289 = vsub.f32 %v85, %v192
  %v290 = vsub.f32 %v86, %v192
  %v291 = vsub.f32 %v87, %v192
  %v292 = vsub.f32 %v88, %v201
  %v293 = vsub.f32 %v89, %v201
  %v294 = vsub.f32 %v90, %v201
  %v295 = vsub.f32 %v91, %v201
  %v296 = vsub.f32 %v92, %v201
  %v297 = vsub.f32 %v93, %v201
  %v298 = vsub.f32 %v94, %v201
  %v299 = vsub.f32 %v95, %v201
  %v300 = vsub.f32 %v96, %v210
  %v301 = vsub.f32 %v97, %v210
  %v302 = vsub.f32 %v98, %v210
  %v303 = vsub.f32 %v99, %v210
  %v304 = vsub.f32 %v100, %v210
  %v305 = vsub.f32 %v101, %v210
  %v306 = vsub.f32 %v102, %v210
  %v307 = vsub.f32 %v103, %v210
  %v308 = vsub.f32 %v104, %v219
  %v309 = vsub.f32 %v105, %v219
  %v310 = vsub.f32 %v106, %v219
  %v311 = vsub.f32 %v107, %v219
  %v312 = vsub.f32 %v108, %v219
  %v313 = vsub.f32 %v109, %v219
  %v314 = vsub.f32 %v110, %v219
  %v315 = vsub.f32 %v111, %v219
  %v316 = vmul.f32 %v220, 1.442695
  %v317 = vpow.pop %v316
  %v318 = vmul.f32 %v221, 1.442695
  %v319 = vpow.pop %v318
  %v320 = vmul.f32 %v222, 1.442695
  %v321 = vpow.pop %v320
  %v322 = vmul.f32 %v223, 1.442695
  %v323 = vpow.pop %v322
  %v324 = vmul.f32 %v224, 1.442695
  %v325 = vpow.pop %v324
  %v326 = vmul.f32 %v225, 1.442695
  %v327 = vpow.pop %v326
  %v328 = vmul.f32 %v226, 1.442695
  %v329 = vpow.pop %v328
  %v330 = vmul.f32 %v227, 1.442695
  %v331 = vpow.pop %v330
  %v332 = vmul.f32 %v228, 1.442695
  %v333 = vpow.pop %v332
  %v334 = vmul.f32 %v229, 1.442695
  %v335 = vpow.pop %v334
  %v336 = vmul.f32 %v230, 1.442695
  %v337 = vpow.pop %v336
  %v338 = vmul.f32 %v231, 1.442695
  %v339 = vpow.pop %v338
  %v340 = vmul.f32 %v232, 1.442695
  %v341 = vpow.pop %v340
  %v342 = vmul.f32 %v233, 1.442695
  %v343 = vpow.pop %v342
  %v344 = vmul.f32 %v234, 1.442695
  %v345 = vpow.pop %v344
  %v346 = vmul.f32 %v235, 1.442695
  %v347 = vpow.pop %v346
  %v348 = vmul.f32 %v236, 1.442695
  %v349 = vpow.pop %v348
  %v350 = vmul.f32 %v237, 1.442695
  %v351 = vpow.pop %v350
  %v352 = vmul.f32 %v238, 1.442695
  %v353 = vpow.pop %v352
  %v354 = vmul.f32 %v239, 1.442695
  %v355 = vpow.pop %v354
  %v356 = vmul.f32 %v240, 1.442695
  %v357 = vpow.pop %v356
  %v358 = vmul.f32 %v241, 1.442695
  %v359 = vpow.pop %v358
  %v360 = vmul.f32 %v242, 1.442695
  %v361 = vpow.pop %v360
  %v362 = vmul.f32 %v243, 1.442695
  %v363 = vpow.pop %v362
  %v364 = vmul.f32 %v244, 1.442695
  %v365 = vpow.pop %v364
  %v366 = vmul.f32 %v245, 1.442695
  %v367 = vpow.pop %v366
  %v368 = vmul.f32 %v246, 1.442695
  %v369 = vpow.pop %v368
  %v370 = vmul.f32 %v247, 1.442695
  %v371 = vpow.pop %v370
  %v372 = vmul.f32 %v248, 1.442695
  %v373 = vpow.pop %v372
  %v374 = vmul.f32 %v249, 1.442695
  %v375 = vpow.pop %v374
  %v376 = vmul.f32 %v250, 1.442695
  %v377 = vpow.pop %v376
  %v378 = vmul.f32 %v251, 1.442695
  %v379 = vpow.pop %v378
  %v380 = vmul.f32 %v252, 1.442695
  %v381 = vpow.pop %v380
  %v382 = vmul.f32 %v253, 1.442695
  %v383 = vpow.pop %v382
  %v384 = vmul.f32 %v254, 1.442695
  %v385 = vpow.pop %v384
  %v386 = vmul.f32 %v255, 1.442695
  %v387 = vpow.pop %v386
  %v388 = vmul.f32 %v256, 1.442695
  %v389 = vpow.pop %v388
  %v390 = vmul.f32 %v257, 1.442695
  %v391 = vpow.pop %v390
  %v392 = vmul.f32 %v258, 1.442695
  %v393 = vpow.pop %v392
  %v394 = vmul.f32 %v259, 1.442695
  %v395 = vpow.pop %v394
  %v396 = vmul.f32 %v260, 1.442695
  %v397 = vpow.pop %v396
  %v398 = vmul.f32 %v261, 1.442695
  %v399 = vpow.pop %v398
  %v400 = vmul.f32 %v262, 1.442695
  %v401 = vpow.pop %v400
  %v402 = vmul.f32 %v263, 1.442695
  %v403 = vpow.pop %v402
  %v404 = vmul.f32 %v264, 1.442695
  %v405 = vpow.pop %v404
  %v406 = vmul.f32 %v265, 1.442695
  %v407 = vpow.pop %v406
  %v408 = vmul.f32 %v266, 1.442695
  %v409 = vpow.pop %v408
  %v410 = vmul.f32 %v267, 1.442695
  %v411 = vpow.pop %v410
  %v412 = vmul.f32 %v268, 1.442695
  %v413 = vpow.pop %v412
  %v414 = vmul.f32 %v269, 1.442695
  %v415 = vpow.pop %v414
  %v416 = vmul.f32 %v270, 1.442695
  %v417 = vpow.pop %v416
  %v418 = vmul.f32 %v271, 1.442695
  %v419 = vpow.pop %v418
  %v420 = vmul.f32 %v272, 1.442695
  %v421 = vpow.pop %v420
  %v422 = vmul.f32 %v273, 1.442695
  %v423 = vpow.pop %v422
  %v424 = vmul.f32 %v274, 1.442695
  %v425 = vpow.pop %v424
  %v426 = vmul.f32 %v275, 1.442695
  %v427 = vpow.pop %v426
  %v428 = vmul.f32 %v276, 1.442695
  %v429 = vpow.pop %v428
  %v430 = vmul.f32 %v277, 1.442695
  %v431 = vpow.pop %v430
  %v432 = vmul.f32 %v278, 1.442695
  %v433 = vpow.pop %v432
  %v434 = vmul.f32 %v279, 1.442695
  %v435 = vpow.pop %v434
  %v436 = vmul.f32 %v280, 1.442695
  %v437 = vpow.pop %v436
  %v438 = vmul.f32 %v281, 1.442695
  %v439 = vpow.pop %v438
  %v440 = vmul.f32 %v282, 1.442695
  %v441 = vpow.pop %v440
  %v442 = vmul.f32 %v283, 1.442695
  %v443 = vpow.pop %v442
  %v444 = vmul.f32 %v284, 1.442695
  %v445 = vpow.pop %v444
  %v446 = vmul.f32 %v285, 1.442695
  %v447 = vpow.pop %v446
  %v448 = vmul.f32 %v286, 1.442695
  %v449 = vpow.pop %v448
  %v450 = vmul.f32 %v287, 1.442695
  %v451 = vpow.pop %v450
  %v452 = vmul.f32 %v288, 1.442695
  %v453 = vpow.pop %v452
  %v454 = vmul.f32 %v289, 1.442695
  %v455 = vpow.pop %v454
  %v456 = vmul.f32 %v290, 1.442695
  %v457 = vpow.pop %v456
  %v458 = vmul.f32 %v291, 1.442695
  %v459 = vpow.pop %v458
  %v460 = vmul.f32 %v292, 1.442695
  %v461 = vpow.pop %v460
  %v462 = vmul.f32 %v293, 1.442695
  %v463 = vpow.pop %v462
  %v464 = vmul.f32 %v294, 1.442695
  %v465 = vpow.pop %v464
  %v466 = vmul.f32 %v295, 1.442695
  %v467 = vpow.pop %v466
  %v468 = vmul.f32 %v296, 1.442695
  %v469 = vpow.pop %v468
  %v470 = vmul.f32 %v297, 1.442695
  %v471 = vpow.pop %v470
  %v472 = vmul.f32 %v298, 1.442695
  %v473 = vpow.pop %v472
  %v474 = vmul.f32 %v299, 1.442695
  %v475 = vpow.pop %v474
  %v476 = vmul.f32 %v300, 1.442695
  %v477 = vpow.pop %v476
  %v478 = vmul.f32 %v301, 1.442695
  %v479 = vpow.pop %v478
  %v480 = vmul.f32 %v302, 1.442695
  %v481 = vpow.pop %v480
  %v482 = vmul.f32 %v303, 1.442695
  %v483 = vpow.pop %v482
  %v484 = vmul.f32 %v304, 1.442695
  %v485 = vpow.pop %v484
  %v486 = vmul.f32 %v305, 1.442695
  %v487 = vpow.pop %v486
  %v488 = vmul.f32 %v306, 1.442695
  %v489 = vpow.pop %v488
  %v490 = vmul.f32 %v307, 1.442695
  %v491 = vpow.pop %v490
  %v492 = vmul.f32 %v308, 1.442695
  %v493 = vpow.pop %v492
  %v494 = vmul.f32 %v309, 1.442695
  %v495 = vpow.pop %v494
  %v496 = vmul.f32 %v310, 1.442695
  %v497 = vpow.pop %v496
  %v498 = vmul.f32 %v311, 1.442695
  %v499 = vpow.pop %v498
  %v500 = vmul.f32 %v312, 1.442695
  %v501 = vpow.pop %v500
  %v502 = vmul.f32 %v313, 1.442695
  %v503 = vpow.pop %v502
  %v504 = vmul.f32 %v314, 1.442695
  %v505 = vpow.pop %v504
  %v506 = vmul.f32 %v315, 1.442695
  %v507 = vpow.pop %v506
  %v508 = vld [vmem:[%s1] sm:$0xff]
  %v509 = vld [vmem:[%s1 + $0x8] sm:$0xff]
  %v510 = vld [vmem:[%s1 + $0x10] sm:$0xff]
  %v511 = vld [vmem:[%s1 + $0x18] sm:$0xff]
  %v512 = vld [vmem:[%s1 + $0x20] sm:$0xff]
  %v513 = vld [vmem:[%s1 + $0x28] sm:$0xff]
  %v514 = vld [vmem:[%s1 + $0x30] sm:$0xff]
  %v515 = vld [vmem:[%s1 + $0x38] sm:$0xff]
  %v516 = vld [vmem:[%s1 + $0x40] sm:$0xff]
  %v517 = vld [vmem:[%s1 + $0x48] sm:$0xff]
  %v518 = vld [vmem:[%s1 + $0x50] sm:$0xff]
  %v519 = vld [vmem:[%s1 + $0x58] sm:$0xff]
  %v520 = vld [vmem:[%s1 + $0x60] sm:$0xff]
  %v521 = vld [vmem:[%s1 + $0x68] sm:$0xff]
  %v522 = vld [vmem:[%s1 + $0x70] sm:$0xff]
  %v523 = vld [vmem:[%s1 + $0x78] sm:$0xff]
  %v524 = vld [vmem:[%s1 + $0x80] sm:$0xff]
  %v525 = vld [vmem:[%s1 + $0x88] sm:$0xff]
  %v526 = vld [vmem:[%s1 + $0x90] sm:$0xff]
  %v527 = vld [vmem:[%s1 + $0x98] sm:$0xff]
  %v528 = vld [vmem:[%s1 + $0xa0] sm:$0xff]
  %v529 = vld [vmem:[%s1 + $0xa8] sm:$0xff]
  %v530 = vld [vmem:[%s1 + $0xb0] sm:$0xff]
  %v531 = vld [vmem:[%s1 + $0xb8] sm:$0xff]
  %v532 = vld [vmem:[%s1 + $0xc0] sm:$0xff]
  %v533 = vld [vmem:[%s1 + $0xc8] sm:$0xff]
  %v534 = vld [vmem:[%s1 + $0xd0] sm:$0xff]
  %v535 = vld [vmem:[%s1 + $0xd8] sm:$0xff]
  %v536 = vld [vmem:[%s1 + $0xe0] sm:$0xff]
  %v537 = vld [vmem:[%s1 + $0xe8] sm:$0xff]
  %v538 = vld [vmem:[%s1 + $0xf0] sm:$0xff]
  %v539 = vld [vmem:[%s1 + $0xf8] sm:$0xff]
  %v540 = vld [vmem:[%s1 + $0x100] sm:$0xff]
  %v541 = vld [vmem:[%s1 + $0x108] sm:$0xff]
  %v542 = vld [vmem:[%s1 + $0x110] sm:$0xff]
  %v543 = vld [vmem:[%s1 + $0x118] sm:$0xff]
  %v544 = vld [vmem:[%s1 + $0x120] sm:$0xff]
  %v545 = vld [vmem:[%s1 + $0x128] sm:$0xff]
  %v546 = vld [vmem:[%s1 + $0x130] sm:$0xff]
  %v547 = vld [vmem:[%s1 + $0x138] sm:$0xff]
  %v548 = vld [vmem:[%s1 + $0x140] sm:$0xff]
  %v549 = vld [vmem:[%s1 + $0x148] sm:$0xff]
  %v550 = vld [vmem:[%s1 + $0x150] sm:$0xff]
  %v551 = vld [vmem:[%s1 + $0x158] sm:$0xff]
  %v552 = vld [vmem:[%s1 + $0x160] sm:$0xff]
  %v553 = vld [vmem:[%s1 + $0x168] sm:$0xff]
  %v554 = vld [vmem:[%s1 + $0x170] sm:$0xff]
  %v555 = vld [vmem:[%s1 + $0x178] sm:$0xff]
  %v556 = vld [vmem:[%s1 + $0x180] sm:$0xff]
  %v557 = vld [vmem:[%s1 + $0x188] sm:$0xff]
  %v558 = vld [vmem:[%s1 + $0x190] sm:$0xff]
  %v559 = vld [vmem:[%s1 + $0x198] sm:$0xff]
  %v560 = vld [vmem:[%s1 + $0x1a0] sm:$0xff]
  %v561 = vld [vmem:[%s1 + $0x1a8] sm:$0xff]
  %v562 = vld [vmem:[%s1 + $0x1b0] sm:$0xff]
  %v563 = vld [vmem:[%s1 + $0x1b8] sm:$0xff]
  %v564 = vld [vmem:[%s1 + $0x1c0] sm:$0xff]
  %v565 = vld [vmem:[%s1 + $0x1c8] sm:$0xff]
  %v566 = vld [vmem:[%s1 + $0x1d0] sm:$0xff]
  %v567 = vld [vmem:[%s1 + $0x1d8] sm:$0xff]
  %v568 = vld [vmem:[%s1 + $0x1e0] sm:$0xff]
  %v569 = vld [vmem:[%s1 + $0x1e8] sm:$0xff]
  %v570 = vld [vmem:[%s1 + $0x1f0] sm:$0xff]
  %v571 = vld [vmem:[%s1 + $0x1f8] sm:$0xff]
  %v572 = vld [vmem:[%s1 + $0x200] sm:$0xff]
  %v573 = vld [vmem:[%s1 + $0x208] sm:$0xff]
  %v574 = vld [vmem:[%s1 + $0x210] sm:$0xff]
  %v575 = vld [vmem:[%s1 + $0x218] sm:$0xff]
  %v576 = vld [vmem:[%s1 + $0x220] sm:$0xff]
  %v577 = vld [vmem:[%s1 + $0x228] sm:$0xff]
  %v578 = vld [vmem:[%s1 + $0x230] sm:$0xff]
  %v579 = vld [vmem:[%s1 + $0x238] sm:$0xff]
  %v580 = vld [vmem:[%s1 + $0x240] sm:$0xff]
  %v581 = vld [vmem:[%s1 + $0x248] sm:$0xff]
  %v582 = vld [vmem:[%s1 + $0x250] sm:$0xff]
  %v583 = vld [vmem:[%s1 + $0x258] sm:$0xff]
  %v584 = vld [vmem:[%s1 + $0x260] sm:$0xff]
  %v585 = vld [vmem:[%s1 + $0x268] sm:$0xff]
  %v586 = vld [vmem:[%s1 + $0x270] sm:$0xff]
  %v587 = vld [vmem:[%s1 + $0x278] sm:$0xff]
  %v588 = vld [vmem:[%s1 + $0x280] sm:$0xff]
  %v589 = vld [vmem:[%s1 + $0x288] sm:$0xff]
  %v590 = vld [vmem:[%s1 + $0x290] sm:$0xff]
  %v591 = vld [vmem:[%s1 + $0x298] sm:$0xff]
  %v592 = vld [vmem:[%s1 + $0x2a0] sm:$0xff]
  %v593 = vld [vmem:[%s1 + $0x2a8] sm:$0xff]
  %v594 = vld [vmem:[%s1 + $0x2b0] sm:$0xff]
  %v595 = vld [vmem:[%s1 + $0x2b8] sm:$0xff]
  %v596 = vld [vmem:[%s1 + $0x2c0] sm:$0xff]
  %v597 = vld [vmem:[%s1 + $0x2c8] sm:$0xff]
  %v598 = vld [vmem:[%s1 + $0x2d0] sm:$0xff]
  %v599 = vld [vmem:[%s1 + $0x2d8] sm:$0xff]
  %v600 = vld [vmem:[%s1 + $0x2e0] sm:$0xff]
  %v601 = vld [vmem:[%s1 + $0x2e8] sm:$0xff]
  %v602 = vld [vmem:[%s1 + $0x2f0] sm:$0xff]
  %v603 = vld [vmem:[%s1 + $0x2f8] sm:$0xff]
  %v604 = vld [vmem:[%s1 + $0x300] sm:$0xff]
  %v605 = vld [vmem:[%s1 + $0x308] sm:$0xff]
  %v606 = vld [vmem:[%s1 + $0x310] sm:$0xff]
  %v607 = vld [vmem:[%s1 + $0x318] sm:$0xff]
  %v608 = vld [vmem:[%s1 + $0x320] sm:$0xff]
  %v609 = vld [vmem:[%s1 + $0x328] sm:$0xff]
  %v610 = vld [vmem:[%s1 + $0x330] sm:$0xff]
  %v611 = vld [vmem:[%s1 + $0x338] sm:$0xff]
  %v612 = vld [vmem:[%s1 + $0x340] sm:$0xff]
  %v613 = vld [vmem:[%s1 + $0x348] sm:$0xff]
  %v614 = vld [vmem:[%s1 + $0x350] sm:$0xff]
  %v615 = vld [vmem:[%s1 + $0x358] sm:$0xff]
  %v616 = vld [vmem:[%s1 + $0x360] sm:$0xff]
  %v617 = vld [vmem:[%s1 + $0x368] sm:$0xff]
  %v618 = vld [vmem:[%s1 + $0x370] sm:$0xff]
  %v619 = vld [vmem:[%s1 + $0x378] sm:$0xff]
  %v620 = vld [vmem:[%s1 + $0x380] sm:$0xff]
  %v621 = vld [vmem:[%s1 + $0x388] sm:$0xff]
  %v622 = vld [vmem:[%s1 + $0x390] sm:$0xff]
  %v623 = vld [vmem:[%s1 + $0x398] sm:$0xff]
  %v624 = vld [vmem:[%s1 + $0x3a0] sm:$0xff]
  %v625 = vld [vmem:[%s1 + $0x3a8] sm:$0xff]
  %v626 = vld [vmem:[%s1 + $0x3b0] sm:$0xff]
  %v627 = vld [vmem:[%s1 + $0x3b8] sm:$0xff]
  %v628 = vld [vmem:[%s1 + $0x3c0] sm:$0xff]
  %v629 = vld [vmem:[%s1 + $0x3c8] sm:$0xff]
  %v630 = vld [vmem:[%s1 + $0x3d0] sm:$0xff]
  %v631 = vld [vmem:[%s1 + $0x3d8] sm:$0xff]
  %v632 = vld [vmem:[%s1 + $0x3e0] sm:$0xff]
  %v633 = vld [vmem:[%s1 + $0x3e8] sm:$0xff]
  %v634 = vld [vmem:[%s1 + $0x3f0] sm:$0xff]
  %v635 = vld [vmem:[%s1 + $0x3f8] sm:$0xff]
  %636 = vmatprep.subr.mxu0 0.0
  %637 = vmatpush1.msra.mxu0 %v523
  %638 = vmatprep.subr.mxu0 0.0
  %639 = vmatpush1.msra.mxu0 %v522
  %640 = vmatprep.subr.mxu0 0.0
  %641 = vmatpush1.msra.mxu0 %v521
  %642 = vmatprep.subr.mxu0 0.0
  %643 = vmatpush1.msra.mxu0 %v520
  %644 = vmatprep.subr.mxu0 0.0
  %645 = vmatpush1.msra.mxu0 %v519
  %646 = vmatprep.subr.mxu0 0.0
  %647 = vmatpush1.msra.mxu0 %v518
  %648 = vmatprep.subr.mxu0 0.0
  %649 = vmatpush1.msra.mxu0 %v517
  %650 = vmatprep.subr.mxu0 0.0
  %651 = vmatpush1.msra.mxu0 %v516
  %652 = vmatprep.subr.mxu0 0.0
  %653 = vmatpush1.msra.mxu0 %v515
  %654 = vmatprep.subr.mxu0 0.0
  %655 = vmatpush1.msra.mxu0 %v514
  %656 = vmatprep.subr.mxu0 0.0
  %657 = vmatpush1.msra.mxu0 %v513
  %658 = vmatprep.subr.mxu0 0.0
  %659 = vmatpush1.msra.mxu0 %v512
  %660 = vmatprep.subr.mxu0 0.0
  %661 = vmatpush1.msra.mxu0 %v511
  %662 = vmatprep.subr.mxu0 0.0
  %663 = vmatpush1.msra.mxu0 %v510
  %664 = vmatprep.subr.mxu0 0.0
  %665 = vmatpush1.msra.mxu0 %v509
  %666 = vmatprep.subr.mxu0 0.0
  %667 = vmatpush1.msra.mxu0 %v508
  %668 = vmatprep.subr.mxu0 0.0
  %669 = vmatpush2.msra.mxu0 %v539
  %670 = vmatprep.subr.mxu0 0.0
  %671 = vmatpush2.msra.mxu0 %v538
  %672 = vmatprep.subr.mxu0 0.0
  %673 = vmatpush2.msra.mxu0 %v537
  %674 = vmatprep.subr.mxu0 0.0
  %675 = vmatpush2.msra.mxu0 %v536
  %676 = vmatprep.subr.mxu0 0.0
  %677 = vmatpush2.msra.mxu0 %v535
  %678 = vmatprep.subr.mxu0 0.0
  %679 = vmatpush2.msra.mxu0 %v534
  %680 = vmatprep.subr.mxu0 0.0
  %681 = vmatpush2.msra.mxu0 %v533
  %682 = vmatprep.subr.mxu0 0.0
  %683 = vmatpush2.msra.mxu0 %v532
  %684 = vmatprep.subr.mxu0 0.0
  %685 = vmatpush2.msra.mxu0 %v531
  %686 = vmatprep.subr.mxu0 0.0
  %687 = vmatpush2.msra.mxu0 %v530
  %688 = vmatprep.subr.mxu0 0.0
  %689 = vmatpush2.msra.mxu0 %v529
  %690 = vmatprep.subr.mxu0 0.0
  %691 = vmatpush2.msra.mxu0 %v528
  %692 = vmatprep.subr.mxu0 0.0
  %693 = vmatpush2.msra.mxu0 %v527
  %694 = vmatprep.subr.mxu0 0.0
  %695 = vmatpush2.msra.mxu0 %v526
  %696 = vmatprep.subr.mxu0 0.0
  %697 = vmatpush2.msra.mxu0 %v525
  %698 = vmatprep.subr.mxu0 0.0
  %699 = vmatpush2.msra.mxu0 %v524
  %700 = vmatprep.mubr.f32.mxu0 %v319
  %701 = vmatmul.mubr.f32.gmra.mxu0 %v317
  %v702 = vpop.f32.mrf.mxu0
  %v703 = vadd.f32 0.0, %v702
  %v704 = vpop.f32.mrf.mxu0
  %705 = vmatprep.mubr.f32.mxu0 %v335
  %706 = vmatmul.mubr.f32.gmra.mxu0 %v333
  %v707 = vpop.f32.mrf.mxu0
  %v708 = vadd.f32 0.0, %v707
  %v709 = vpop.f32.mrf.mxu0
  %710 = vmatprep.mubr.f32.mxu0 %v351
  %711 = vmatmul.mubr.f32.gmra.mxu0 %v349
  %v712 = vpop.f32.mrf.mxu0
  %v713 = vadd.f32 0.0, %v712
  %v714 = vpop.f32.mrf.mxu0
  %715 = vmatprep.mubr.f32.mxu0 %v367
  %716 = vmatmul.mubr.f32.gmra.mxu0 %v365
  %v717 = vpop.f32.mrf.mxu0
  %v718 = vadd.f32 0.0, %v717
  %v719 = vpop.f32.mrf.mxu0
  %720 = vmatprep.mubr.f32.mxu0 %v383
  %721 = vmatmul.mubr.f32.gmra.mxu0 %v381
  %v722 = vpop.f32.mrf.mxu0
  %v723 = vadd.f32 0.0, %v722
  %v724 = vpop.f32.mrf.mxu0
  %725 = vmatprep.mubr.f32.mxu0 %v399
  %726 = vmatmul.mubr.f32.gmra.mxu0 %v397
  %v727 = vpop.f32.mrf.mxu0
  %v728 = vadd.f32 0.0, %v727
  %v729 = vpop.f32.mrf.mxu0
  %730 = vmatprep.mubr.f32.mxu0 %v415
  %731 = vmatmul.mubr.f32.gmra.mxu0 %v413
  %v732 = vpop.f32.mrf.mxu0
  %v733 = vadd.f32 0.0, %v732
  %v734 = vpop.f32.mrf.mxu0
  %735 = vmatprep.mubr.f32.mxu0 %v431
  %736 = vmatmul.mubr.f32.gmra.mxu0 %v429
  %v737 = vpop.f32.mrf.mxu0
  %v738 = vadd.f32 0.0, %v737
  %v739 = vpop.f32.mrf.mxu0
  %740 = vmatprep.mubr.f32.mxu0 %v447
  %741 = vmatmul.mubr.f32.gmra.mxu0 %v445
  %v742 = vpop.f32.mrf.mxu0
  %v743 = vadd.f32 0.0, %v742
  %v744 = vpop.f32.mrf.mxu0
  %745 = vmatprep.mubr.f32.mxu0 %v463
  %746 = vmatmul.mubr.f32.gmra.mxu0 %v461
  %v747 = vpop.f32.mrf.mxu0
  %v748 = vadd.f32 0.0, %v747
  %v749 = vpop.f32.mrf.mxu0
  %750 = vmatprep.mubr.f32.mxu0 %v479
  %751 = vmatmul.mubr.f32.gmra.mxu0 %v477
  %v752 = vpop.f32.mrf.mxu0
  %v753 = vadd.f32 0.0, %v752
  %v754 = vpop.f32.mrf.mxu0
  %755 = vmatprep.mubr.f32.mxu0 %v495
  %756 = vmatmul.mubr.f32.gmra.mxu0 %v493
  %v757 = vpop.f32.mrf.mxu0
  %v758 = vadd.f32 0.0, %v757
  %v759 = vpop.f32.mrf.mxu0
  %760 = vdwg.mxu0
  %761 = vmatprep.subr.mxu0 0.0
  %762 = vmatpush1.msra.mxu0 %v555
  %763 = vmatprep.subr.mxu0 0.0
  %764 = vmatpush1.msra.mxu0 %v554
  %765 = vmatprep.subr.mxu0 0.0
  %766 = vmatpush1.msra.mxu0 %v553
  %767 = vmatprep.subr.mxu0 0.0
  %768 = vmatpush1.msra.mxu0 %v552
  %769 = vmatprep.subr.mxu0 0.0
  %770 = vmatpush1.msra.mxu0 %v551
  %771 = vmatprep.subr.mxu0 0.0
  %772 = vmatpush1.msra.mxu0 %v550
  %773 = vmatprep.subr.mxu0 0.0
  %774 = vmatpush1.msra.mxu0 %v549
  %775 = vmatprep.subr.mxu0 0.0
  %776 = vmatpush1.msra.mxu0 %v548
  %777 = vmatprep.subr.mxu0 0.0
  %778 = vmatpush1.msra.mxu0 %v547
  %779 = vmatprep.subr.mxu0 0.0
  %780 = vmatpush1.msra.mxu0 %v546
  %781 = vmatprep.subr.mxu0 0.0
  %782 = vmatpush1.msra.mxu0 %v545
  %783 = vmatprep.subr.mxu0 0.0
  %784 = vmatpush1.msra.mxu0 %v544
  %785 = vmatprep.subr.mxu0 0.0
  %786 = vmatpush1.msra.mxu0 %v543
  %787 = vmatprep.subr.mxu0 0.0
  %788 = vmatpush1.msra.mxu0 %v542
  %789 = vmatprep.subr.mxu0 0.0
  %790 = vmatpush1.msra.mxu0 %v541
  %791 = vmatprep.subr.mxu0 0.0
  %792 = vmatpush1.msra.mxu0 %v540
  %793 = vmatprep.subr.mxu0 0.0
  %794 = vmatpush2.msra.mxu0 %v571
  %795 = vmatprep.subr.mxu0 0.0
  %796 = vmatpush2.msra.mxu0 %v570
  %797 = vmatprep.subr.mxu0 0.0
  %798 = vmatpush2.msra.mxu0 %v569
  %799 = vmatprep.subr.mxu0 0.0
  %800 = vmatpush2.msra.mxu0 %v568
  %801 = vmatprep.subr.mxu0 0.0
  %802 = vmatpush2.msra.mxu0 %v567
  %803 = vmatprep.subr.mxu0 0.0
  %804 = vmatpush2.msra.mxu0 %v566
  %805 = vmatprep.subr.mxu0 0.0
  %806 = vmatpush2.msra.mxu0 %v565
  %807 = vmatprep.subr.mxu0 0.0
  %808 = vmatpush2.msra.mxu0 %v564
  %809 = vmatprep.subr.mxu0 0.0
  %810 = vmatpush2.msra.mxu0 %v563
  %811 = vmatprep.subr.mxu0 0.0
  %812 = vmatpush2.msra.mxu0 %v562
  %813 = vmatprep.subr.mxu0 0.0
  %814 = vmatpush2.msra.mxu0 %v561
  %815 = vmatprep.subr.mxu0 0.0
  %816 = vmatpush2.msra.mxu0 %v560
  %817 = vmatprep.subr.mxu0 0.0
  %818 = vmatpush2.msra.mxu0 %v559
  %819 = vmatprep.subr.mxu0 0.0
  %820 = vmatpush2.msra.mxu0 %v558
  %821 = vmatprep.subr.mxu0 0.0
  %822 = vmatpush2.msra.mxu0 %v557
  %823 = vmatprep.subr.mxu0 0.0
  %824 = vmatpush2.msra.mxu0 %v556
  %825 = vmatprep.mubr.f32.mxu0 %v323
  %826 = vmatmul.mubr.f32.gmra.mxu0 %v321
  %v827 = vpop.f32.mrf.mxu0
  %v828 = vadd.f32 %v703, %v827
  %v829 = vpop.f32.mrf.mxu0
  %830 = vmatprep.mubr.f32.mxu0 %v339
  %831 = vmatmul.mubr.f32.gmra.mxu0 %v337
  %v832 = vpop.f32.mrf.mxu0
  %v833 = vadd.f32 %v708, %v832
  %v834 = vpop.f32.mrf.mxu0
  %835 = vmatprep.mubr.f32.mxu0 %v355
  %836 = vmatmul.mubr.f32.gmra.mxu0 %v353
  %v837 = vpop.f32.mrf.mxu0
  %v838 = vadd.f32 %v713, %v837
  %v839 = vpop.f32.mrf.mxu0
  %840 = vmatprep.mubr.f32.mxu0 %v371
  %841 = vmatmul.mubr.f32.gmra.mxu0 %v369
  %v842 = vpop.f32.mrf.mxu0
  %v843 = vadd.f32 %v718, %v842
  %v844 = vpop.f32.mrf.mxu0
  %845 = vmatprep.mubr.f32.mxu0 %v387
  %846 = vmatmul.mubr.f32.gmra.mxu0 %v385
  %v847 = vpop.f32.mrf.mxu0
  %v848 = vadd.f32 %v723, %v847
  %v849 = vpop.f32.mrf.mxu0
  %850 = vmatprep.mubr.f32.mxu0 %v403
  %851 = vmatmul.mubr.f32.gmra.mxu0 %v401
  %v852 = vpop.f32.mrf.mxu0
  %v853 = vadd.f32 %v728, %v852
  %v854 = vpop.f32.mrf.mxu0
  %855 = vmatprep.mubr.f32.mxu0 %v419
  %856 = vmatmul.mubr.f32.gmra.mxu0 %v417
  %v857 = vpop.f32.mrf.mxu0
  %v858 = vadd.f32 %v733, %v857
  %v859 = vpop.f32.mrf.mxu0
  %860 = vmatprep.mubr.f32.mxu0 %v435
  %861 = vmatmul.mubr.f32.gmra.mxu0 %v433
  %v862 = vpop.f32.mrf.mxu0
  %v863 = vadd.f32 %v738, %v862
  %v864 = vpop.f32.mrf.mxu0
  %865 = vmatprep.mubr.f32.mxu0 %v451
  %866 = vmatmul.mubr.f32.gmra.mxu0 %v449
  %v867 = vpop.f32.mrf.mxu0
  %v868 = vadd.f32 %v743, %v867
  %v869 = vpop.f32.mrf.mxu0
  %870 = vmatprep.mubr.f32.mxu0 %v467
  %871 = vmatmul.mubr.f32.gmra.mxu0 %v465
  %v872 = vpop.f32.mrf.mxu0
  %v873 = vadd.f32 %v748, %v872
  %v874 = vpop.f32.mrf.mxu0
  %875 = vmatprep.mubr.f32.mxu0 %v483
  %876 = vmatmul.mubr.f32.gmra.mxu0 %v481
  %v877 = vpop.f32.mrf.mxu0
  %v878 = vadd.f32 %v753, %v877
  %v879 = vpop.f32.mrf.mxu0
  %880 = vmatprep.mubr.f32.mxu0 %v499
  %881 = vmatmul.mubr.f32.gmra.mxu0 %v497
  %v882 = vpop.f32.mrf.mxu0
  %v883 = vadd.f32 %v758, %v882
  %v884 = vpop.f32.mrf.mxu0
  %885 = vdwg.mxu0
  %886 = vmatprep.subr.mxu0 0.0
  %887 = vmatpush1.msra.mxu0 %v587
  %888 = vmatprep.subr.mxu0 0.0
  %889 = vmatpush1.msra.mxu0 %v586
  %890 = vmatprep.subr.mxu0 0.0
  %891 = vmatpush1.msra.mxu0 %v585
  %892 = vmatprep.subr.mxu0 0.0
  %893 = vmatpush1.msra.mxu0 %v584
  %894 = vmatprep.subr.mxu0 0.0
  %895 = vmatpush1.msra.mxu0 %v583
  %896 = vmatprep.subr.mxu0 0.0
  %897 = vmatpush1.msra.mxu0 %v582
  %898 = vmatprep.subr.mxu0 0.0
  %899 = vmatpush1.msra.mxu0 %v581
  %900 = vmatprep.subr.mxu0 0.0
  %901 = vmatpush1.msra.mxu0 %v580
  %902 = vmatprep.subr.mxu0 0.0
  %903 = vmatpush1.msra.mxu0 %v579
  %904 = vmatprep.subr.mxu0 0.0
  %905 = vmatpush1.msra.mxu0 %v578
  %906 = vmatprep.subr.mxu0 0.0
  %907 = vmatpush1.msra.mxu0 %v577
  %908 = vmatprep.subr.mxu0 0.0
  %909 = vmatpush1.msra.mxu0 %v576
  %910 = vmatprep.subr.mxu0 0.0
  %911 = vmatpush1.msra.mxu0 %v575
  %912 = vmatprep.subr.mxu0 0.0
  %913 = vmatpush1.msra.mxu0 %v574
  %914 = vmatprep.subr.mxu0 0.0
  %915 = vmatpush1.msra.mxu0 %v573
  %916 = vmatprep.subr.mxu0 0.0
  %917 = vmatpush1.msra.mxu0 %v572
  %918 = vmatprep.subr.mxu0 0.0
  %919 = vmatpush2.msra.mxu0 %v603
  %920 = vmatprep.subr.mxu0 0.0
  %921 = vmatpush2.msra.mxu0 %v602
  %922 = vmatprep.subr.mxu0 0.0
  %923 = vmatpush2.msra.mxu0 %v601
  %924 = vmatprep.subr.mxu0 0.0
  %925 = vmatpush2.msra.mxu0 %v600
  %926 = vmatprep.subr.mxu0 0.0
  %927 = vmatpush2.msra.mxu0 %v599
  %928 = vmatprep.subr.mxu0 0.0
  %929 = vmatpush2.msra.mxu0 %v598
  %930 = vmatprep.subr.mxu0 0.0
  %931 = vmatpush2.msra.mxu0 %v597
  %932 = vmatprep.subr.mxu0 0.0
  %933 = vmatpush2.msra.mxu0 %v596
  %934 = vmatprep.subr.mxu0 0.0
  %935 = vmatpush2.msra.mxu0 %v595
  %936 = vmatprep.subr.mxu0 0.0
  %937 = vmatpush2.msra.mxu0 %v594
  %938 = vmatprep.subr.mxu0 0.0
  %939 = vmatpush2.msra.mxu0 %v593
  %940 = vmatprep.subr.mxu0 0.0
  %941 = vmatpush2.msra.mxu0 %v592
  %942 = vmatprep.subr.mxu0 0.0
  %943 = vmatpush2.msra.mxu0 %v591
  %944 = vmatprep.subr.mxu0 0.0
  %945 = vmatpush2.msra.mxu0 %v590
  %946 = vmatprep.subr.mxu0 0.0
  %947 = vmatpush2.msra.mxu0 %v589
  %948 = vmatprep.subr.mxu0 0.0
  %949 = vmatpush2.msra.mxu0 %v588
  %950 = vmatprep.mubr.f32.mxu0 %v327
  %951 = vmatmul.mubr.f32.gmra.mxu0 %v325
  %v952 = vpop.f32.mrf.mxu0
  %v953 = vadd.f32 %v828, %v952
  %v954 = vpop.f32.mrf.mxu0
  %955 = vmatprep.mubr.f32.mxu0 %v343
  %956 = vmatmul.mubr.f32.gmra.mxu0 %v341
  %v957 = vpop.f32.mrf.mxu0
  %v958 = vadd.f32 %v833, %v957
  %v959 = vpop.f32.mrf.mxu0
  %960 = vmatprep.mubr.f32.mxu0 %v359
  %961 = vmatmul.mubr.f32.gmra.mxu0 %v357
  %v962 = vpop.f32.mrf.mxu0
  %v963 = vadd.f32 %v838, %v962
  %v964 = vpop.f32.mrf.mxu0
  %965 = vmatprep.mubr.f32.mxu0 %v375
  %966 = vmatmul.mubr.f32.gmra.mxu0 %v373
  %v967 = vpop.f32.mrf.mxu0
  %v968 = vadd.f32 %v843, %v967
  %v969 = vpop.f32.mrf.mxu0
  %970 = vmatprep.mubr.f32.mxu0 %v391
  %971 = vmatmul.mubr.f32.gmra.mxu0 %v389
  %v972 = vpop.f32.mrf.mxu0
  %v973 = vadd.f32 %v848, %v972
  %v974 = vpop.f32.mrf.mxu0
  %975 = vmatprep.mubr.f32.mxu0 %v407
  %976 = vmatmul.mubr.f32.gmra.mxu0 %v405
  %v977 = vpop.f32.mrf.mxu0
  %v978 = vadd.f32 %v853, %v977
  %v979 = vpop.f32.mrf.mxu0
  %980 = vmatprep.mubr.f32.mxu0 %v423
  %981 = vmatmul.mubr.f32.gmra.mxu0 %v421
  %v982 = vpop.f32.mrf.mxu0
  %v983 = vadd.f32 %v858, %v982
  %v984 = vpop.f32.mrf.mxu0
  %985 = vmatprep.mubr.f32.mxu0 %v439
  %986 = vmatmul.mubr.f32.gmra.mxu0 %v437
  %v987 = vpop.f32.mrf.mxu0
  %v988 = vadd.f32 %v863, %v987
  %v989 = vpop.f32.mrf.mxu0
  %990 = vmatprep.mubr.f32.mxu0 %v455
  %991 = vmatmul.mubr.f32.gmra.mxu0 %v453
  %v992 = vpop.f32.mrf.mxu0
  %v993 = vadd.f32 %v868, %v992
  %v994 = vpop.f32.mrf.mxu0
  %995 = vmatprep.mubr.f32.mxu0 %v471
  %996 = vmatmul.mubr.f32.gmra.mxu0 %v469
  %v997 = vpop.f32.mrf.mxu0
  %v998 = vadd.f32 %v873, %v997
  %v999 = vpop.f32.mrf.mxu0
  %1000 = vmatprep.mubr.f32.mxu0 %v487
  %1001 = vmatmul.mubr.f32.gmra.mxu0 %v485
  %v1002 = vpop.f32.mrf.mxu0
  %v1003 = vadd.f32 %v878, %v1002
  %v1004 = vpop.f32.mrf.mxu0
  %1005 = vmatprep.mubr.f32.mxu0 %v503
  %1006 = vmatmul.mubr.f32.gmra.mxu0 %v501
  %v1007 = vpop.f32.mrf.mxu0
  %v1008 = vadd.f32 %v883, %v1007
  %v1009 = vpop.f32.mrf.mxu0
  %1010 = vdwg.mxu0
  %1011 = vmatprep.subr.mxu0 0.0
  %1012 = vmatpush1.msra.mxu0 %v619
  %1013 = vmatprep.subr.mxu0 0.0
  %1014 = vmatpush1.msra.mxu0 %v618
  %1015 = vmatprep.subr.mxu0 0.0
  %1016 = vmatpush1.msra.mxu0 %v617
  %1017 = vmatprep.subr.mxu0 0.0
  %1018 = vmatpush1.msra.mxu0 %v616
  %1019 = vmatprep.subr.mxu0 0.0
  %1020 = vmatpush1.msra.mxu0 %v615
  %1021 = vmatprep.subr.mxu0 0.0
  %1022 = vmatpush1.msra.mxu0 %v614
  %1023 = vmatprep.subr.mxu0 0.0
  %1024 = vmatpush1.msra.mxu0 %v613
  %1025 = vmatprep.subr.mxu0 0.0
  %1026 = vmatpush1.msra.mxu0 %v612
  %1027 = vmatprep.subr.mxu0 0.0
  %1028 = vmatpush1.msra.mxu0 %v611
  %1029 = vmatprep.subr.mxu0 0.0
  %1030 = vmatpush1.msra.mxu0 %v610
  %1031 = vmatprep.subr.mxu0 0.0
  %1032 = vmatpush1.msra.mxu0 %v609
  %1033 = vmatprep.subr.mxu0 0.0
  %1034 = vmatpush1.msra.mxu0 %v608
  %1035 = vmatprep.subr.mxu0 0.0
  %1036 = vmatpush1.msra.mxu0 %v607
  %1037 = vmatprep.subr.mxu0 0.0
  %1038 = vmatpush1.msra.mxu0 %v606
  %1039 = vmatprep.subr.mxu0 0.0
  %1040 = vmatpush1.msra.mxu0 %v605
  %1041 = vmatprep.subr.mxu0 0.0
  %1042 = vmatpush1.msra.mxu0 %v604
  %1043 = vmatprep.subr.mxu0 0.0
  %1044 = vmatpush2.msra.mxu0 %v635
  %1045 = vmatprep.subr.mxu0 0.0
  %1046 = vmatpush2.msra.mxu0 %v634
  %1047 = vmatprep.subr.mxu0 0.0
  %1048 = vmatpush2.msra.mxu0 %v633
  %1049 = vmatprep.subr.mxu0 0.0
  %1050 = vmatpush2.msra.mxu0 %v632
  %1051 = vmatprep.subr.mxu0 0.0
  %1052 = vmatpush2.msra.mxu0 %v631
  %1053 = vmatprep.subr.mxu0 0.0
  %1054 = vmatpush2.msra.mxu0 %v630
  %1055 = vmatprep.subr.mxu0 0.0
  %1056 = vmatpush2.msra.mxu0 %v629
  %1057 = vmatprep.subr.mxu0 0.0
  %1058 = vmatpush2.msra.mxu0 %v628
  %1059 = vmatprep.subr.mxu0 0.0
  %1060 = vmatpush2.msra.mxu0 %v627
  %1061 = vmatprep.subr.mxu0 0.0
  %1062 = vmatpush2.msra.mxu0 %v626
  %1063 = vmatprep.subr.mxu0 0.0
  %1064 = vmatpush2.msra.mxu0 %v625
  %1065 = vmatprep.subr.mxu0 0.0
  %1066 = vmatpush2.msra.mxu0 %v624
  %1067 = vmatprep.subr.mxu0 0.0
  %1068 = vmatpush2.msra.mxu0 %v623
  %1069 = vmatprep.subr.mxu0 0.0
  %1070 = vmatpush2.msra.mxu0 %v622
  %1071 = vmatprep.subr.mxu0 0.0
  %1072 = vmatpush2.msra.mxu0 %v621
  %1073 = vmatprep.subr.mxu0 0.0
  %1074 = vmatpush2.msra.mxu0 %v620
  %1075 = vmatprep.mubr.f32.mxu0 %v331
  %1076 = vmatmul.mubr.f32.gmra.mxu0 %v329
  %v1077 = vpop.f32.mrf.mxu0
  %v1078 = vadd.f32 %v953, %v1077
  %v1079 = vpop.f32.mrf.mxu0
  %1080 = vmatprep.mubr.f32.mxu0 %v347
  %1081 = vmatmul.mubr.f32.gmra.mxu0 %v345
  %v1082 = vpop.f32.mrf.mxu0
  %v1083 = vadd.f32 %v958, %v1082
  %v1084 = vpop.f32.mrf.mxu0
  %1085 = vmatprep.mubr.f32.mxu0 %v363
  %1086 = vmatmul.mubr.f32.gmra.mxu0 %v361
  %v1087 = vpop.f32.mrf.mxu0
  %v1088 = vadd.f32 %v963, %v1087
  %v1089 = vpop.f32.mrf.mxu0
  %1090 = vmatprep.mubr.f32.mxu0 %v379
  %1091 = vmatmul.mubr.f32.gmra.mxu0 %v377
  %v1092 = vpop.f32.mrf.mxu0
  %v1093 = vadd.f32 %v968, %v1092
  %v1094 = vpop.f32.mrf.mxu0
  %1095 = vmatprep.mubr.f32.mxu0 %v395
  %1096 = vmatmul.mubr.f32.gmra.mxu0 %v393
  %v1097 = vpop.f32.mrf.mxu0
  %v1098 = vadd.f32 %v973, %v1097
  %v1099 = vpop.f32.mrf.mxu0
  %1100 = vmatprep.mubr.f32.mxu0 %v411
  %1101 = vmatmul.mubr.f32.gmra.mxu0 %v409
  %v1102 = vpop.f32.mrf.mxu0
  %v1103 = vadd.f32 %v978, %v1102
  %v1104 = vpop.f32.mrf.mxu0
  %1105 = vmatprep.mubr.f32.mxu0 %v427
  %1106 = vmatmul.mubr.f32.gmra.mxu0 %v425
  %v1107 = vpop.f32.mrf.mxu0
  %v1108 = vadd.f32 %v983, %v1107
  %v1109 = vpop.f32.mrf.mxu0
  %1110 = vmatprep.mubr.f32.mxu0 %v443
  %1111 = vmatmul.mubr.f32.gmra.mxu0 %v441
  %v1112 = vpop.f32.mrf.mxu0
  %v1113 = vadd.f32 %v988, %v1112
  %v1114 = vpop.f32.mrf.mxu0
  %1115 = vmatprep.mubr.f32.mxu0 %v459
  %1116 = vmatmul.mubr.f32.gmra.mxu0 %v457
  %v1117 = vpop.f32.mrf.mxu0
  %v1118 = vadd.f32 %v993, %v1117
  %v1119 = vpop.f32.mrf.mxu0
  %1120 = vmatprep.mubr.f32.mxu0 %v475
  %1121 = vmatmul.mubr.f32.gmra.mxu0 %v473
  %v1122 = vpop.f32.mrf.mxu0
  %v1123 = vadd.f32 %v998, %v1122
  %v1124 = vpop.f32.mrf.mxu0
  %1125 = vmatprep.mubr.f32.mxu0 %v491
  %1126 = vmatmul.mubr.f32.gmra.mxu0 %v489
  %v1127 = vpop.f32.mrf.mxu0
  %v1128 = vadd.f32 %v1003, %v1127
  %v1129 = vpop.f32.mrf.mxu0
  %1130 = vmatprep.mubr.f32.mxu0 %v507
  %1131 = vmatmul.mubr.f32.gmra.mxu0 %v505
  %v1132 = vpop.f32.mrf.mxu0
  %v1133 = vadd.f32 %v1008, %v1132
  %v1134 = vpop.f32.mrf.mxu0
  %1135 = vdwg.mxu0
  %v1136 = vrcp.pop %v1078
  %v1137 = vmul.f32 1.0, %v1136
  %v1138 = vrcp.pop %v1083
  %v1139 = vmul.f32 1.0, %v1138
  %v1140 = vrcp.pop %v1088
  %v1141 = vmul.f32 1.0, %v1140
  %v1142 = vrcp.pop %v1093
  %v1143 = vmul.f32 1.0, %v1142
  %v1144 = vrcp.pop %v1098
  %v1145 = vmul.f32 1.0, %v1144
  %v1146 = vrcp.pop %v1103
  %v1147 = vmul.f32 1.0, %v1146
  %v1148 = vrcp.pop %v1108
  %v1149 = vmul.f32 1.0, %v1148
  %v1150 = vrcp.pop %v1113
  %v1151 = vmul.f32 1.0, %v1150
  %v1152 = vrcp.pop %v1118
  %v1153 = vmul.f32 1.0, %v1152
  %v1154 = vrcp.pop %v1123
  %v1155 = vmul.f32 1.0, %v1154
  %v1156 = vrcp.pop %v1128
  %v1157 = vmul.f32 1.0, %v1156
  %v1158 = vrcp.pop %v1133
  %v1159 = vmul.f32 1.0, %v1158
  %v1160 = vxor.u32 %v1137, 2147483648
  %v1161 = vxor.u32 %v1139, 2147483648
  %v1162 = vxor.u32 %v1141, 2147483648
  %v1163 = vxor.u32 %v1143, 2147483648
  %v1164 = vxor.u32 %v1145, 2147483648
  %v1165 = vxor.u32 %v1147, 2147483648
  %v1166 = vxor.u32 %v1149, 2147483648
  %v1167 = vxor.u32 %v1151, 2147483648
  %v1168 = vxor.u32 %v1153, 2147483648
  %v1169 = vxor.u32 %v1155, 2147483648
  %v1170 = vxor.u32 %v1157, 2147483648
  %v1171 = vxor.u32 %v1159, 2147483648
  %v1172 = vmul.f32 %v1160, 1.442695
  %v1173 = vpow.pop %v1172
  %v1174 = vmul.f32 %v1161, 1.442695
  %v1175 = vpow.pop %v1174
  %v1176 = vmul.f32 %v1162, 1.442695
  %v1177 = vpow.pop %v1176
  %v1178 = vmul.f32 %v1163, 1.442695
  %v1179 = vpow.pop %v1178
  %v1180 = vmul.f32 %v1164, 1.442695
  %v1181 = vpow.pop %v1180
  %v1182 = vmul.f32 %v1165, 1.442695
  %v1183 = vpow.pop %v1182
  %v1184 = vmul.f32 %v1166, 1.442695
  %v1185 = vpow.pop %v1184
  %v1186 = vmul.f32 %v1167, 1.442695
  %v1187 = vpow.pop %v1186
  %v1188 = vmul.f32 %v1168, 1.442695
  %v1189 = vpow.pop %v1188
  %v1190 = vmul.f32 %v1169, 1.442695
  %v1191 = vpow.pop %v1190
  %v1192 = vmul.f32 %v1170, 1.442695
  %v1193 = vpow.pop %v1192
  %v1194 = vmul.f32 %v1171, 1.442695
  %v1195 = vpow.pop %v1194
  %v1196 = vadd.f32 %v1173, 1.0
  %v1197 = vadd.f32 %v1175, 1.0
  %v1198 = vadd.f32 %v1177, 1.0
  %v1199 = vadd.f32 %v1179, 1.0
  %v1200 = vadd.f32 %v1181, 1.0
  %v1201 = vadd.f32 %v1183, 1.0
  %v1202 = vadd.f32 %v1185, 1.0
  %v1203 = vadd.f32 %v1187, 1.0
  %v1204 = vadd.f32 %v1189, 1.0
  %v1205 = vadd.f32 %v1191, 1.0
  %v1206 = vadd.f32 %v1193, 1.0
  %v1207 = vadd.f32 %v1195, 1.0
  %v1208 = vrcp.pop %v1196
  %v1209 = vmul.f32 1.0, %v1208
  %v1210 = vrcp.pop %v1197
  %v1211 = vmul.f32 1.0, %v1210
  %v1212 = vrcp.pop %v1198
  %v1213 = vmul.f32 1.0, %v1212
  %v1214 = vrcp.pop %v1199
  %v1215 = vmul.f32 1.0, %v1214
  %v1216 = vrcp.pop %v1200
  %v1217 = vmul.f32 1.0, %v1216
  %v1218 = vrcp.pop %v1201
  %v1219 = vmul.f32 1.0, %v1218
  %v1220 = vrcp.pop %v1202
  %v1221 = vmul.f32 1.0, %v1220
  %v1222 = vrcp.pop %v1203
  %v1223 = vmul.f32 1.0, %v1222
  %v1224 = vrcp.pop %v1204
  %v1225 = vmul.f32 1.0, %v1224
  %v1226 = vrcp.pop %v1205
  %v1227 = vmul.f32 1.0, %v1226
  %v1228 = vrcp.pop %v1206
  %v1229 = vmul.f32 1.0, %v1228
  %v1230 = vrcp.pop %v1207
  %v1231 = vmul.f32 1.0, %v1230
  %1233 = vset.pattern.permute.xlu0 2
  %1234 = vperm.xlu0 %1233, %v1137
  %v1235 = vpop.permute.xlu0 %1234
  %1238 = vset.pattern.permute.xlu0 2
  %1239 = vperm.xlu0 %1238, %v1139
  %v1240 = vpop.permute.xlu0 %1239
  %1243 = vset.pattern.permute.xlu0 2
  %1244 = vperm.xlu0 %1243, %v1149
  %v1245 = vpop.permute.xlu0 %1244
  %1248 = vset.pattern.permute.xlu0 2
  %1249 = vperm.xlu0 %1248, %v1151
  %v1250 = vpop.permute.xlu0 %1249
  %v1252 = vmul.f32 %v1078, %v1235
  %v1253 = vmul.f32 %v1083, %v1240
  %v1254 = vmul.f32 %v1108, %v1245
  %v1255 = vmul.f32 %v1113, %v1250
  %v1256 = vmul.f32 %v317, %v1235
  %v1257 = vmul.f32 %v319, %v1235
  %v1258 = vmul.f32 %v321, %v1235
  %v1259 = vmul.f32 %v323, %v1235
  %v1260 = vmul.f32 %v325, %v1235
  %v1261 = vmul.f32 %v327, %v1235
  %v1262 = vmul.f32 %v329, %v1235
  %v1263 = vmul.f32 %v331, %v1235
  %v1264 = vmul.f32 %v333, %v1240
  %v1265 = vmul.f32 %v335, %v1240
  %v1266 = vmul.f32 %v337, %v1240
  %v1267 = vmul.f32 %v339, %v1240
  %v1268 = vmul.f32 %v341, %v1240
  %v1269 = vmul.f32 %v343, %v1240
  %v1270 = vmul.f32 %v345, %v1240
  %v1271 = vmul.f32 %v347, %v1240
  %v1272 = vmul.f32 %v413, %v1245
  %v1273 = vmul.f32 %v415, %v1245
  %v1274 = vmul.f32 %v417, %v1245
  %v1275 = vmul.f32 %v419, %v1245
  %v1276 = vmul.f32 %v421, %v1245
  %v1277 = vmul.f32 %v423, %v1245
  %v1278 = vmul.f32 %v425, %v1245
  %v1279 = vmul.f32 %v427, %v1245
  %v1280 = vmul.f32 %v429, %v1250
  %v1281 = vmul.f32 %v431, %v1250
  %v1282 = vmul.f32 %v433, %v1250
  %v1283 = vmul.f32 %v435, %v1250
  %v1284 = vmul.f32 %v437, %v1250
  %v1285 = vmul.f32 %v439, %v1250
  %v1286 = vmul.f32 %v441, %v1250
  %v1287 = vmul.f32 %v443, %v1250
  %1288 = vst [vmem:[%s3] sm:$0xff] %v1256
  %1289 = vst [vmem:[%s3 + $0x8] sm:$0xff] %v1257
  %1290 = vst [vmem:[%s3 + $0x10] sm:$0xff] %v1258
  %1291 = vst [vmem:[%s3 + $0x18] sm:$0xff] %v1259
  %1292 = vst [vmem:[%s3 + $0x20] sm:$0xff] %v1260
  %1293 = vst [vmem:[%s3 + $0x28] sm:$0xff] %v1261
  %1294 = vst [vmem:[%s3 + $0x30] sm:$0xff] %v1262
  %1295 = vst [vmem:[%s3 + $0x38] sm:$0xff] %v1263
  %1296 = vst [vmem:[%s3 + $0x40] sm:$0xff] %v1264
  %1297 = vst [vmem:[%s3 + $0x48] sm:$0xff] %v1265
  %1298 = vst [vmem:[%s3 + $0x50] sm:$0xff] %v1266
  %1299 = vst [vmem:[%s3 + $0x58] sm:$0xff] %v1267
  %1300 = vst [vmem:[%s3 + $0x60] sm:$0xff] %v1268
  %1301 = vst [vmem:[%s3 + $0x68] sm:$0xff] %v1269
  %1302 = vst [vmem:[%s3 + $0x70] sm:$0xff] %v1270
  %1303 = vst [vmem:[%s3 + $0x78] sm:$0xff] %v1271
  %1304 = vst [vmem:[%s3 + $0x80] sm:$0xff] %v1272
  %1305 = vst [vmem:[%s3 + $0x88] sm:$0xff] %v1273
  %1306 = vst [vmem:[%s3 + $0x90] sm:$0xff] %v1274
  %1307 = vst [vmem:[%s3 + $0x98] sm:$0xff] %v1275
  %1308 = vst [vmem:[%s3 + $0xa0] sm:$0xff] %v1276
  %1309 = vst [vmem:[%s3 + $0xa8] sm:$0xff] %v1277
  %1310 = vst [vmem:[%s3 + $0xb0] sm:$0xff] %v1278
  %1311 = vst [vmem:[%s3 + $0xb8] sm:$0xff] %v1279
  %1312 = vst [vmem:[%s3 + $0xc0] sm:$0xff] %v1280
  %1313 = vst [vmem:[%s3 + $0xc8] sm:$0xff] %v1281
  %1314 = vst [vmem:[%s3 + $0xd0] sm:$0xff] %v1282
  %1315 = vst [vmem:[%s3 + $0xd8] sm:$0xff] %v1283
  %1316 = vst [vmem:[%s3 + $0xe0] sm:$0xff] %v1284
  %1317 = vst [vmem:[%s3 + $0xe8] sm:$0xff] %v1285
  %1318 = vst [vmem:[%s3 + $0xf0] sm:$0xff] %v1286
  %1319 = vst [vmem:[%s3 + $0xf8] sm:$0xff] %v1287
  %v1320 = vmul.f32 %v1137, %v1209
  %v1321 = vmul.f32 %v1139, %v1211
  %v1322 = vmul.f32 %v1141, %v1213
  %v1323 = vmul.f32 %v1143, %v1215
  %v1324 = vmul.f32 %v1145, %v1217
  %v1325 = vmul.f32 %v1147, %v1219
  %v1326 = vmul.f32 %v1149, %v1221
  %v1327 = vmul.f32 %v1151, %v1223
  %v1328 = vmul.f32 %v1153, %v1225
  %v1329 = vmul.f32 %v1155, %v1227
  %v1330 = vmul.f32 %v1157, %v1229
  %v1331 = vmul.f32 %v1159, %v1231
  %1333 = vset.pattern.permute.xlu0 2
  %1334 = vperm.xlu0 %1333, %v1320
  %v1335 = vpop.permute.xlu0 %1334
  %1338 = vset.pattern.permute.xlu0 2
  %1339 = vperm.xlu0 %1338, %v1321
  %v1340 = vpop.permute.xlu0 %1339
  %1343 = vset.pattern.permute.xlu0 2
  %1344 = vperm.xlu0 %1343, %v1322
  %v1345 = vpop.permute.xlu0 %1344
  %1348 = vset.pattern.permute.xlu0 2
  %1349 = vperm.xlu0 %1348, %v1323
  %v1350 = vpop.permute.xlu0 %1349
  %1353 = vset.pattern.permute.xlu0 2
  %1354 = vperm.xlu0 %1353, %v1324
  %v1355 = vpop.permute.xlu0 %1354
  %1358 = vset.pattern.permute.xlu0 2
  %1359 = vperm.xlu0 %1358, %v1325
  %v1360 = vpop.permute.xlu0 %1359
  %1363 = vset.pattern.permute.xlu0 2
  %1364 = vperm.xlu0 %1363, %v1326
  %v1365 = vpop.permute.xlu0 %1364
  %1368 = vset.pattern.permute.xlu0 2
  %1369 = vperm.xlu0 %1368, %v1327
  %v1370 = vpop.permute.xlu0 %1369
  %1373 = vset.pattern.permute.xlu0 2
  %1374 = vperm.xlu0 %1373, %v1328
  %v1375 = vpop.permute.xlu0 %1374
  %1378 = vset.pattern.permute.xlu0 2
  %1379 = vperm.xlu0 %1378, %v1329
  %v1380 = vpop.permute.xlu0 %1379
  %1383 = vset.pattern.permute.xlu0 2
  %1384 = vperm.xlu0 %1383, %v1330
  %v1385 = vpop.permute.xlu0 %1384
  %1388 = vset.pattern.permute.xlu0 2
  %1389 = vperm.xlu0 %1388, %v1331
  %v1390 = vpop.permute.xlu0 %1389
  %v1392 = vmul.f32 %v1078, %v1335
  %v1393 = vmul.f32 %v1083, %v1340
  %v1394 = vmul.f32 %v1088, %v1345
  %v1395 = vmul.f32 %v1093, %v1350
  %v1396 = vmul.f32 %v1098, %v1355
  %v1397 = vmul.f32 %v1103, %v1360
  %v1398 = vmul.f32 %v1108, %v1365
  %v1399 = vmul.f32 %v1113, %v1370
  %v1400 = vmul.f32 %v1118, %v1375
  %v1401 = vmul.f32 %v1123, %v1380
  %v1402 = vmul.f32 %v1128, %v1385
  %v1403 = vmul.f32 %v1133, %v1390
  %v1404 = vld [vmem:[%s2] sm:$0xff]
  %v1405 = vld [vmem:[%s2 + $0x8] sm:$0xff]
  %v1406 = vld [vmem:[%s2 + $0x10] sm:$0xff]
  %v1407 = vld [vmem:[%s2 + $0x18] sm:$0xff]
  %vm1408 = vcmask 785408
  %v1410 = vsel %vm1408, %v1404, 0
  %v1413 = vsel %vm1408, %v1405, 0
  %v1416 = vsel %vm1408, %v1406, 0
  %v1419 = vsel %vm1408, %v1407, 0
  %1421 = vmatprep.subr.mxu0 0.0
  %1422 = vmatpush1.msra.mxu0 0.0
  %1423 = vmatprep.subr.mxu0 0.0
  %1424 = vmatpush1.msra.mxu0 0.0
  %1425 = vmatprep.subr.mxu0 0.0
  %1426 = vmatpush1.msra.mxu0 0.0
  %1427 = vmatprep.subr.mxu0 0.0
  %1428 = vmatpush1.msra.mxu0 0.0
  %1429 = vmatprep.subr.mxu0 0.0
  %1430 = vmatpush1.msra.mxu0 %v1403
  %1431 = vmatprep.subr.mxu0 0.0
  %1432 = vmatpush1.msra.mxu0 %v1402
  %1433 = vmatprep.subr.mxu0 0.0
  %1434 = vmatpush1.msra.mxu0 %v1401
  %1435 = vmatprep.subr.mxu0 0.0
  %1436 = vmatpush1.msra.mxu0 %v1400
  %1437 = vmatprep.subr.mxu0 0.0
  %1438 = vmatpush1.msra.mxu0 %v1399
  %1439 = vmatprep.subr.mxu0 0.0
  %1440 = vmatpush1.msra.mxu0 %v1398
  %1441 = vmatprep.subr.mxu0 0.0
  %1442 = vmatpush1.msra.mxu0 %v1397
  %1443 = vmatprep.subr.mxu0 0.0
  %1444 = vmatpush1.msra.mxu0 %v1396
  %1445 = vmatprep.subr.mxu0 0.0
  %1446 = vmatpush1.msra.mxu0 %v1395
  %1447 = vmatprep.subr.mxu0 0.0
  %1448 = vmatpush1.msra.mxu0 %v1394
  %1449 = vmatprep.subr.mxu0 0.0
  %1450 = vmatpush1.msra.mxu0 %v1393
  %1451 = vmatprep.subr.mxu0 0.0
  %1452 = vmatpush1.msra.mxu0 %v1392
  %1453 = vmatprep.subr.mxu0 0.0
  %1454 = vmatpush2.msra.mxu0 0.0
  %1455 = vmatprep.subr.mxu0 0.0
  %1456 = vmatpush2.msra.mxu0 0.0
  %1457 = vmatprep.subr.mxu0 0.0
  %1458 = vmatpush2.msra.mxu0 0.0
  %1459 = vmatprep.subr.mxu0 0.0
  %1460 = vmatpush2.msra.mxu0 0.0
  %1461 = vmatprep.subr.mxu0 0.0
  %1462 = vmatpush2.msra.mxu0 0.0
  %1463 = vmatprep.subr.mxu0 0.0
  %1464 = vmatpush2.msra.mxu0 0.0
  %1465 = vmatprep.subr.mxu0 0.0
  %1466 = vmatpush2.msra.mxu0 0.0
  %1467 = vmatprep.subr.mxu0 0.0
  %1468 = vmatpush2.msra.mxu0 0.0
  %1469 = vmatprep.subr.mxu0 0.0
  %1470 = vmatpush2.msra.mxu0 0.0
  %1471 = vmatprep.subr.mxu0 0.0
  %1472 = vmatpush2.msra.mxu0 0.0
  %1473 = vmatprep.subr.mxu0 0.0
  %1474 = vmatpush2.msra.mxu0 0.0
  %1475 = vmatprep.subr.mxu0 0.0
  %1476 = vmatpush2.msra.mxu0 0.0
  %1477 = vmatprep.subr.mxu0 0.0
  %1478 = vmatpush2.msra.mxu0 0.0
  %1479 = vmatprep.subr.mxu0 0.0
  %1480 = vmatpush2.msra.mxu0 0.0
  %1481 = vmatprep.subr.mxu0 0.0
  %1482 = vmatpush2.msra.mxu0 0.0
  %1483 = vmatprep.subr.mxu0 0.0
  %1484 = vmatpush2.msra.mxu0 0.0
  %1485 = vmatprep.mubr.f32.mxu0 0.0
  %1486 = vmatmul.mubr.f32.gmra.mxu0 %v1410
  %v1487 = vpop.f32.mrf.mxu0
  %v1488 = vadd.f32 0.0, %v1487
  %v1489 = vpop.f32.mrf.mxu0
  %1490 = vmatprep.mubr.f32.mxu0 0.0
  %1491 = vmatmul.mubr.f32.gmra.mxu0 %v1413
  %v1492 = vpop.f32.mrf.mxu0
  %v1493 = vadd.f32 0.0, %v1492
  %v1494 = vpop.f32.mrf.mxu0
  %1495 = vmatprep.mubr.f32.mxu0 0.0
  %1496 = vmatmul.mubr.f32.gmra.mxu0 %v1416
  %v1497 = vpop.f32.mrf.mxu0
  %v1498 = vadd.f32 0.0, %v1497
  %v1499 = vpop.f32.mrf.mxu0
  %1500 = vmatprep.mubr.f32.mxu0 0.0
  %1501 = vmatmul.mubr.f32.gmra.mxu0 %v1419
  %v1502 = vpop.f32.mrf.mxu0
  %v1503 = vadd.f32 0.0, %v1502
  %v1504 = vpop.f32.mrf.mxu0
  %1505 = vdwg.mxu0
  %1507 = vset.pattern.permute.xlu0 2
  %1508 = vperm.xlu0 %1507, %v1488
  %v1509 = vpop.permute.xlu0 %1508
  %1512 = vset.pattern.permute.xlu0 2
  %1513 = vperm.xlu0 %1512, %v1493
  %v1514 = vpop.permute.xlu0 %1513
  %1517 = vset.pattern.permute.xlu0 2
  %1518 = vperm.xlu0 %1517, %v1498
  %v1519 = vpop.permute.xlu0 %1518
  %1522 = vset.pattern.permute.xlu0 2
  %1523 = vperm.xlu0 %1522, %v1503
  %v1524 = vpop.permute.xlu0 %1523
  %v1526 = vrcp.pop %v1509
  %v1527 = vmul.f32 %v1488, %v1526
  %v1528 = vrcp.pop %v1514
  %v1529 = vmul.f32 %v1493, %v1528
  %v1530 = vrcp.pop %v1519
  %v1531 = vmul.f32 %v1498, %v1530
  %v1532 = vrcp.pop %v1524
  %v1533 = vmul.f32 %v1503, %v1532
  %v1534 = vmul.f32 %v1252, 0.8
  %v1535 = vmul.f32 %v1253, 0.8
  %v1536 = vmul.f32 %v1254, 0.8
  %v1537 = vmul.f32 %v1255, 0.8
  %v1538 = vmul.f32 %v1527, 0.2
  %v1539 = vmul.f32 %v1529, 0.2
  %v1540 = vmul.f32 %v1531, 0.2
  %v1541 = vmul.f32 %v1533, 0.2
  %v1542 = vadd.f32 %v1534, %v1538
  %v1543 = vadd.f32 %v1535, %v1539
  %v1544 = vadd.f32 %v1536, %v1540
  %v1545 = vadd.f32 %v1537, %v1541
  %vm1546 = vcmask 15360
  %1547 = vst.msk [vmem:[%s4] sm:$0xff] %vm1546, %v1542
  %1548 = vst.msk [vmem:[%s4 + $0x8] sm:$0xff] %vm1546, %v1543
  %1549 = vst.msk [vmem:[%s4 + $0x10] sm:$0xff] %vm1546, %v1544
  %1550 = vst.msk [vmem:[%s4 + $0x18] sm:$0xff] %vm1546, %v1545
  %vm1551 = vcmask 23568
  %1552 = vst.msk [vmem:[%s4] sm:$0xff] %vm1551, %v1209
  %1553 = vst.msk [vmem:[%s4 + $0x8] sm:$0xff] %vm1551, %v1211
  %1554 = vst.msk [vmem:[%s4 + $0x10] sm:$0xff] %vm1551, %v1221
  %1555 = vst.msk [vmem:[%s4 + $0x18] sm:$0xff] %vm1551, %v1223
  // Predicated region
  $region14: #{_forward.1} parent=0 // pred_check
    _
  $region15: #{_forward.1} parent=0 // pred_check_branch
    %1557 = sbr.rel (0) target = $region17
  $region16: #{_forward.1} parent=0 // pred_region
    _
  $region17: #{_forward.1} parent=0 // pred_fallthru
    _
  // Predicated region
  $region18: #{_forward.1} parent=0 // pred_check
    _
  $region19: #{_forward.1} parent=0 // pred_check_branch
    %1559 = sbr.rel (0) target = $region21
  $region20: #{_forward.1} parent=0 // pred_region
    _
  $region21: #{_forward.1} parent=0 // pred_fallthru
    _
  // Predicated region
  $region22: #{_forward.1} parent=0 // pred_check
    _
  $region23: #{_forward.1} parent=0 // pred_check_branch
    %1561 = sbr.rel (0) target = $region25
  $region24: #{_forward.1} parent=0 // pred_region
    _
  $region25: #{_forward.1} parent=0 // pred_fallthru
    _
  // Predicated region
  $region26: #{_forward.1} parent=0 // pred_check
    _
  $region27: #{_forward.1} parent=0 // pred_check_branch
    %1563 = sbr.rel (0) target = $region29
  $region28: #{_forward.1} parent=0 // pred_region
    _
  $region29: #{_forward.1} parent=0 // pred_fallthru
    _

</llo_original>
